<compile_context>
chip_gen: v7x
topology: tpu7x:2x2x1
jax: 0.10.0
libtpu: 0.0.40
codegen_flags: <defaults>
</compile_context>

<pallas_src>
import functools
import math

import jax
import jax.numpy as jnp
from jax import lax
from jax.experimental import pallas as pl
from jax.experimental.pallas import tpu as pltpu

# ---------------- model hyper-parameters (small, consistent with module) ----
N = 2          # batch
S = 8          # sequence length
M = 32         # d_model (== "size")
H = 4          # attention heads
DK = M // H    # per-head dim
DFF = 64       # feed-forward hidden dim
EPS = 1e-6     # LayerNorm eps (annotated-transformer LayerNorm)
LANES = 128    # lane padding for the packed parameter slabs


def _layernorm(x, a, b):
    # Annotated-transformer LayerNorm: a * (x - mean) / (std + eps) + b,
    # with torch.std's unbiased (ddof=1) estimator.
    mean = jnp.mean(x, axis=-1, keepdims=True)
    var = jnp.sum((x - mean) ** 2, axis=-1, keepdims=True) * (1.0 / (x.shape[-1] - 1))
    std = jnp.sqrt(var)
    return a * (x - mean) / (std + EPS) + b


def _pad_lanes(v, lanes=LANES):
    return jnp.pad(v, ((0, 0), (0, lanes - v.shape[1])))


def pack_params(params, *, num_heads=H):
    """One-time (init-time) parameter packing into two lane-padded slabs."""
    m = params["wq"].shape[0]
    dk = m // num_heads
    dff = params["w1"].shape[1]
    assert 3 * m <= LANES and dff <= LANES
    inv_sqrt_dk = 1.0 / math.sqrt(dk)

    # fused QKV weight/bias; 1/sqrt(dk) folded into the Q projection
    # (a one-time weight transform, not an input pre-scale).
    w_qkv = jnp.concatenate(
        [params["wq"] * inv_sqrt_dk, params["wk"], params["wv"]], axis=1)   # (m, 3m)
    b_qkv = jnp.concatenate(
        [params["bq"] * inv_sqrt_dk, params["bk"], params["bv"]], axis=1)   # (1, 3m)

    # (8, 128) vector slab: one row per tiny vector parameter.
    vec_rows = [params["ln1_a"], params["ln1_b"], b_qkv, params["bo"],
                params["ln2_a"], params["ln2_b"], params["b1"], params["b2"]]
    vec_slab = jnp.concatenate([_pad_lanes(r) for r in vec_rows], axis=0)

    # (3m + dff, 128) weight slab: w_qkv | wo | w1 | w2 stacked along sublanes.
    w_slab = jnp.concatenate(
        [_pad_lanes(w_qkv), _pad_lanes(params["wo"]),
         _pad_lanes(params["w1"]), _pad_lanes(params["w2"])], axis=0)

    return {"vec": vec_slab, "w": w_slab}


@functools.partial(jax.jit, static_argnames=("num_heads",))
def encoder_layer_pallas(x, mask, packed, *, num_heads=H):
    n, s, m = x.shape
    dk = m // num_heads
    dff = packed["w"].shape[0] - 3 * m

    # Per-call: additive attention-mask bias (0 = attend, -1e9 = masked),
    # pre-stacked per (batch, head, query-row) to match the in-kernel
    # sublane stacking of the score tiles.
    mask_bias = (mask.astype(jnp.float32) - 1.0) * 1e9                       # (n, 1, s)
    bias_slab = jnp.broadcast_to(
        mask_bias[:, :, None, :], (n, num_heads, s, s)
    ).reshape(n * num_heads * s, s)                                          # (n*H*s, s)

    def kernel(x_ref, bias_ref, vec_ref, w_ref, out_ref):
        x2d = x_ref[...]                                       # (n*s, m)

        # ---- static views into the packed parameter slabs (lane offset 0) ----
        ln1_a = vec_ref[0:1, 0:m]
        ln1_b = vec_ref[1:2, 0:m]
        b_qkv = vec_ref[2:3, 0:3 * m]
        bo    = vec_ref[3:4, 0:m]
        ln2_a = vec_ref[4:5, 0:m]
        ln2_b = vec_ref[5:6, 0:m]
        b1    = vec_ref[6:7, 0:dff]
        b2    = vec_ref[7:8, 0:m]

        w_qkv = w_ref[0:m, 0:3 * m]
        wo    = w_ref[m:2 * m, 0:m]
        w1    = w_ref[2 * m:3 * m, 0:dff]
        w2    = w_ref[3 * m:3 * m + dff, 0:m]

        # -------- sublayer 0: pre-norm self-attention + residual ----------
        xn = _layernorm(x2d, ln1_a, ln1_b)
        # fused QKV projection (1/sqrt(dk) already folded into the Q columns)
        qkv = jnp.dot(xn, w_qkv, preferred_element_type=jnp.float32) + b_qkv  # (n*s, 3m)

        # All (batch, head) score tiles, stacked along the sublane axis.
        # Per-head tiles are sliced directly from qkv (single lane-slice level).
        sc_tiles = []
        for b in range(n):
            rows = slice(b * s, (b + 1) * s)
            for h in range(num_heads):
                qh = qkv[rows, h * dk:(h + 1) * dk]
                kh = qkv[rows, m + h * dk:m + (h + 1) * dk]
                # contract over dk directly -- no materialized kh.T
                sc_tiles.append(lax.dot_general(
                    qh, kh, (((1,), (1,)), ((), ())),
                    preferred_element_type=jnp.float32))
        sc = jnp.concatenate(sc_tiles, axis=0) + bias_ref[...]   # (n*H*s, s)

        # Softmax issued ONCE over the stacked block (softmax is per-row, so
        # sublane stacking is exactly equivalent to per-head softmax).
        e = jnp.exp(sc - jnp.max(sc, axis=-1, keepdims=True))
        p = e * pl.reciprocal(jnp.sum(e, axis=-1, keepdims=True), approx=True)

        # Per-(batch, head) PV matmul + folded (per-head) output projection.
        batch_outs = []
        for b in range(n):
            rows = slice(b * s, (b + 1) * s)
            acc = None
            for h in range(num_heads):
                r0 = (b * num_heads + h) * s
                p_bh = p[r0:r0 + s, :]                               # sublane-aligned
                vh = qkv[rows, 2 * m + h * dk:2 * m + (h + 1) * dk]
                pv = jnp.dot(p_bh, vh, preferred_element_type=jnp.float32)    # (s, dk)
                proj = jnp.dot(pv, wo[h * dk:(h + 1) * dk, :],
                               preferred_element_type=jnp.float32)            # (s, m)
                acc = proj if acc is None else acc + proj
            batch_outs.append(acc)
        attn_out = jnp.concatenate(batch_outs, axis=0)            # (n*s, m)
        x1 = x2d + attn_out + bo                                  # dropout = identity

        # -------- sublayer 1: pre-norm feed-forward + residual -------------
        xn2 = _layernorm(x1, ln2_a, ln2_b)
        hdn = jnp.maximum(
            jnp.dot(xn2, w1, preferred_element_type=jnp.float32) + b1, 0.0)
        ff = jnp.dot(hdn, w2, preferred_element_type=jnp.float32) + b2

        out_ref[...] = (x1 + ff).astype(out_ref.dtype)

    vmem_spec = pl.BlockSpec(memory_space=pltpu.MemorySpace.VMEM)
    # Single invocation (no grid): whole working set lives in VMEM (~0.1 MB).
    out2d = pl.pallas_call(
        kernel,
        out_shape=jax.ShapeDtypeStruct((n * s, m), x.dtype),
        in_specs=[vmem_spec] * 4,
        out_specs=vmem_spec,
    )(x.reshape(n * s, m), bias_slab, packed["vec"], packed["w"])
    return out2d.reshape(n, s, m)


# ---------------- pure-JAX reference (for correctness check) ---------------
def encoder_layer_ref(x, mask, p):
    xn = _layernorm(x, p["ln1_a"], p["ln1_b"])
    q = xn @ p["wq"] + p["bq"]
    k = xn @ p["wk"] + p["bk"]
    v = xn @ p["wv"] + p["bv"]
    qh = q.reshape(N, S, H, DK).transpose(0, 2, 1, 3)
    kh = k.reshape(N, S, H, DK).transpose(0, 2, 1, 3)
    vh = v.reshape(N, S, H, DK).transpose(0, 2, 1, 3)
    s = (qh @ kh.transpose(0, 1, 3, 2)) / math.sqrt(DK)      # (N,H,S,S)
    m4 = mask[:, :, None, :]                                  # (N,1,1,S)
    s = jnp.where(m4 == 0, -1e9, s)
    p_attn = jax.nn.softmax(s, axis=-1)
    attn = (p_attn @ vh).transpose(0, 2, 1, 3).reshape(N, S, M)
    x1 = x + (attn @ p["wo"] + p["bo"])
    xn2 = _layernorm(x1, p["ln2_a"], p["ln2_b"])
    ff = jnp.maximum(xn2 @ p["w1"] + p["b1"], 0.0) @ p["w2"] + p["b2"]
    return x1 + ff


def make_params(key):
    ks = jax.random.split(key, 8)
    scale = 0.1
    return {
        "ln1_a": jnp.ones((1, M), jnp.float32),
        "ln1_b": jnp.zeros((1, M), jnp.float32),
        "wq": scale * jax.random.normal(ks[0], (M, M), jnp.float32),
        "bq": jnp.zeros((1, M), jnp.float32),
        "wk": scale * jax.random.normal(ks[1], (M, M), jnp.float32),
        "bk": jnp.zeros((1, M), jnp.float32),
        "wv": scale * jax.random.normal(ks[2], (M, M), jnp.float32),
        "bv": jnp.zeros((1, M), jnp.float32),
        "wo": scale * jax.random.normal(ks[3], (M, M), jnp.float32),
        "bo": scale * jax.random.normal(ks[4], (1, M), jnp.float32),
        "ln2_a": jnp.ones((1, M), jnp.float32),
        "ln2_b": jnp.zeros((1, M), jnp.float32),
        "w1": scale * jax.random.normal(ks[5], (M, DFF), jnp.float32),
        "b1": scale * jax.random.normal(ks[6], (1, DFF), jnp.float32),
        "w2": scale * jax.random.normal(ks[7], (DFF, M), jnp.float32),
        "b2": jnp.zeros((1, M), jnp.float32),
    }


if __name__ == "__main__":
    key = jax.random.PRNGKey(0)
    k_x, k_p = jax.random.split(key)
    x = jax.random.normal(k_x, (N, S, M), jnp.float32)

    # mask (N, 1, S): 1 = valid key position, 0 = masked (padding)
    lengths = jnp.array([S, S - 2], jnp.int32)
    mask = (jnp.arange(S)[None, None, :] < lengths[:, None, None]).astype(jnp.float32)

    params = make_params(k_p)
    packed = pack_params(params)          # one-time, init-side packing

    out = jax.block_until_ready(encoder_layer_pallas(x, mask, packed))
    ref = encoder_layer_ref(x, mask, params)

    assert out.shape == (N, S, M)
    # Tolerance covers the EUP approximate reciprocal used for the softmax
    # denominator (LayerNorm keeps the exact divide).
    assert jnp.allclose(out, ref, rtol=5e-3, atol=5e-3), (
        f"max abs diff = {jnp.max(jnp.abs(out - ref))}")

    print("KERNEL_OK")
</pallas_src>

<mosaic_0001>
module attributes {stable_mosaic.version = 11 : i64} {
  func.func @kernel(%arg0: memref<16x32xf32, #tpu.memory_space<vmem>>, %arg1: memref<64x8xf32, #tpu.memory_space<vmem>>, %arg2: memref<8x128xf32, #tpu.memory_space<vmem>>, %arg3: memref<160x128xf32, #tpu.memory_space<vmem>>, %arg4: memref<16x32xf32, #tpu.memory_space<vmem>>) attributes {dimension_semantics = [], scalar_prefetch = 0 : i64, scratch_operands = 0 : i64, tpu.core_type = #tpu.core_type<tc>} {
    %c0 = arith.constant 0 : index
    %c0_0 = arith.constant 0 : index
    %0 = vector.load %arg0[%c0, %c0_0] : memref<16x32xf32, #tpu.memory_space<vmem>>, vector<16x32xf32>
    %c0_1 = arith.constant 0 : index
    %c0_2 = arith.constant 0 : index
    %1 = vector.load %arg2[%c0_1, %c0_2] : memref<8x128xf32, #tpu.memory_space<vmem>>, vector<1x32xf32>
    %c1 = arith.constant 1 : index
    %c0_3 = arith.constant 0 : index
    %2 = vector.load %arg2[%c1, %c0_3] : memref<8x128xf32, #tpu.memory_space<vmem>>, vector<1x32xf32>
    %c2 = arith.constant 2 : index
    %c0_4 = arith.constant 0 : index
    %3 = vector.load %arg2[%c2, %c0_4] : memref<8x128xf32, #tpu.memory_space<vmem>>, vector<1x96xf32>
    %c3 = arith.constant 3 : index
    %c0_5 = arith.constant 0 : index
    %4 = vector.load %arg2[%c3, %c0_5] : memref<8x128xf32, #tpu.memory_space<vmem>>, vector<1x32xf32>
    %c4 = arith.constant 4 : index
    %c0_6 = arith.constant 0 : index
    %5 = vector.load %arg2[%c4, %c0_6] : memref<8x128xf32, #tpu.memory_space<vmem>>, vector<1x32xf32>
    %c5 = arith.constant 5 : index
    %c0_7 = arith.constant 0 : index
    %6 = vector.load %arg2[%c5, %c0_7] : memref<8x128xf32, #tpu.memory_space<vmem>>, vector<1x32xf32>
    %c6 = arith.constant 6 : index
    %c0_8 = arith.constant 0 : index
    %7 = vector.load %arg2[%c6, %c0_8] : memref<8x128xf32, #tpu.memory_space<vmem>>, vector<1x64xf32>
    %c7 = arith.constant 7 : index
    %c0_9 = arith.constant 0 : index
    %8 = vector.load %arg2[%c7, %c0_9] : memref<8x128xf32, #tpu.memory_space<vmem>>, vector<1x32xf32>
    %c0_10 = arith.constant 0 : index
    %c0_11 = arith.constant 0 : index
    %9 = vector.load %arg3[%c0_10, %c0_11] : memref<160x128xf32, #tpu.memory_space<vmem>>, vector<32x96xf32>
    %c32 = arith.constant 32 : index
    %c0_12 = arith.constant 0 : index
    %10 = vector.load %arg3[%c32, %c0_12] : memref<160x128xf32, #tpu.memory_space<vmem>>, vector<32x32xf32>
    %c64 = arith.constant 64 : index
    %c0_13 = arith.constant 0 : index
    %11 = vector.load %arg3[%c64, %c0_13] : memref<160x128xf32, #tpu.memory_space<vmem>>, vector<32x64xf32>
    %c96 = arith.constant 96 : index
    %c0_14 = arith.constant 0 : index
    %12 = vector.load %arg3[%c96, %c0_14] : memref<160x128xf32, #tpu.memory_space<vmem>>, vector<64x32xf32>
    %cst = arith.constant dense<0.000000e+00> : vector<16xf32>
    %13 = vector.multi_reduction <add>, %0, %cst [1] : vector<16x32xf32> to vector<16xf32>
    %14 = vector.shape_cast %13 : vector<16xf32> to vector<16x1xf32>
    %cst_15 = arith.constant 3.200000e+01 : f32
    %15 = vector.broadcast %cst_15 : f32 to vector<16x1xf32>
    %16 = arith.divf %14, %15 : vector<16x1xf32>
    %17 = vector.broadcast %16 : vector<16x1xf32> to vector<16x32xf32>
    %18 = arith.subf %0, %17 : vector<16x32xf32>
    %19 = arith.mulf %18, %18 : vector<16x32xf32>
    %cst_16 = arith.constant dense<0.000000e+00> : vector<16xf32>
    %20 = vector.multi_reduction <add>, %19, %cst_16 [1] : vector<16x32xf32> to vector<16xf32>
    %21 = vector.shape_cast %20 : vector<16xf32> to vector<16x1xf32>
    %cst_17 = arith.constant 0.0322580636 : f32
    %22 = vector.broadcast %cst_17 : f32 to vector<16x1xf32>
    %23 = arith.mulf %21, %22 : vector<16x1xf32>
    %24 = math.sqrt %23 : vector<16x1xf32>
    %25 = vector.broadcast %16 : vector<16x1xf32> to vector<16x32xf32>
    %26 = arith.subf %0, %25 : vector<16x32xf32>
    %27 = vector.broadcast %1 : vector<1x32xf32> to vector<16x32xf32>
    %28 = arith.mulf %27, %26 : vector<16x32xf32>
    %cst_18 = arith.constant 9.99999997E-7 : f32
    %29 = vector.broadcast %cst_18 : f32 to vector<16x1xf32>
    %30 = arith.addf %24, %29 : vector<16x1xf32>
    %31 = vector.broadcast %30 : vector<16x1xf32> to vector<16x32xf32>
    %32 = arith.divf %28, %31 : vector<16x32xf32>
    %33 = vector.broadcast %2 : vector<1x32xf32> to vector<16x32xf32>
    %34 = arith.addf %32, %33 : vector<16x32xf32>
    %cst_19 = arith.constant dense<0.000000e+00> : vector<16x96xf32>
    %35 = tpu.matmul %34, %9, %cst_19 {dimension_numbers = #tpu.dot_dimension_numbers<[1], [0], [0], [1], [0, 0, 1, 1], [], []>} : vector<16x32xf32>, vector<32x96xf32>, vector<16x96xf32> -> vector<16x96xf32>
    %36 = vector.broadcast %3 : vector<1x96xf32> to vector<16x96xf32>
    %37 = arith.addf %35, %36 : vector<16x96xf32>
    %38 = vector.extract_strided_slice %37 {offsets = [0, 0], sizes = [8, 8], strides = [1, 1]} : vector<16x96xf32> to vector<8x8xf32>
    %39 = vector.extract_strided_slice %37 {offsets = [0, 32], sizes = [8, 8], strides = [1, 1]} : vector<16x96xf32> to vector<8x8xf32>
    %cst_20 = arith.constant dense<0.000000e+00> : vector<8x8xf32>
    %40 = tpu.matmul %38, %39, %cst_20 {dimension_numbers = #tpu.dot_dimension_numbers<[1], [1], [0], [0], [0, 0, 1, 0], [], []>} : vector<8x8xf32>, vector<8x8xf32>, vector<8x8xf32> -> vector<8x8xf32>
    %41 = vector.extract_strided_slice %37 {offsets = [0, 8], sizes = [8, 8], strides = [1, 1]} : vector<16x96xf32> to vector<8x8xf32>
    %42 = vector.extract_strided_slice %37 {offsets = [0, 40], sizes = [8, 8], strides = [1, 1]} : vector<16x96xf32> to vector<8x8xf32>
    %cst_21 = arith.constant dense<0.000000e+00> : vector<8x8xf32>
    %43 = tpu.matmul %41, %42, %cst_21 {dimension_numbers = #tpu.dot_dimension_numbers<[1], [1], [0], [0], [0, 0, 1, 0], [], []>} : vector<8x8xf32>, vector<8x8xf32>, vector<8x8xf32> -> vector<8x8xf32>
    %44 = vector.extract_strided_slice %37 {offsets = [0, 16], sizes = [8, 8], strides = [1, 1]} : vector<16x96xf32> to vector<8x8xf32>
    %45 = vector.extract_strided_slice %37 {offsets = [0, 48], sizes = [8, 8], strides = [1, 1]} : vector<16x96xf32> to vector<8x8xf32>
    %cst_22 = arith.constant dense<0.000000e+00> : vector<8x8xf32>
    %46 = tpu.matmul %44, %45, %cst_22 {dimension_numbers = #tpu.dot_dimension_numbers<[1], [1], [0], [0], [0, 0, 1, 0], [], []>} : vector<8x8xf32>, vector<8x8xf32>, vector<8x8xf32> -> vector<8x8xf32>
    %47 = vector.extract_strided_slice %37 {offsets = [0, 24], sizes = [8, 8], strides = [1, 1]} : vector<16x96xf32> to vector<8x8xf32>
    %48 = vector.extract_strided_slice %37 {offsets = [0, 56], sizes = [8, 8], strides = [1, 1]} : vector<16x96xf32> to vector<8x8xf32>
    %cst_23 = arith.constant dense<0.000000e+00> : vector<8x8xf32>
    %49 = tpu.matmul %47, %48, %cst_23 {dimension_numbers = #tpu.dot_dimension_numbers<[1], [1], [0], [0], [0, 0, 1, 0], [], []>} : vector<8x8xf32>, vector<8x8xf32>, vector<8x8xf32> -> vector<8x8xf32>
    %50 = vector.extract_strided_slice %37 {offsets = [8, 0], sizes = [8, 8], strides = [1, 1]} : vector<16x96xf32> to vector<8x8xf32>
    %51 = vector.extract_strided_slice %37 {offsets = [8, 32], sizes = [8, 8], strides = [1, 1]} : vector<16x96xf32> to vector<8x8xf32>
    %cst_24 = arith.constant dense<0.000000e+00> : vector<8x8xf32>
    %52 = tpu.matmul %50, %51, %cst_24 {dimension_numbers = #tpu.dot_dimension_numbers<[1], [1], [0], [0], [0, 0, 1, 0], [], []>} : vector<8x8xf32>, vector<8x8xf32>, vector<8x8xf32> -> vector<8x8xf32>
    %53 = vector.extract_strided_slice %37 {offsets = [8, 8], sizes = [8, 8], strides = [1, 1]} : vector<16x96xf32> to vector<8x8xf32>
    %54 = vector.extract_strided_slice %37 {offsets = [8, 40], sizes = [8, 8], strides = [1, 1]} : vector<16x96xf32> to vector<8x8xf32>
    %cst_25 = arith.constant dense<0.000000e+00> : vector<8x8xf32>
    %55 = tpu.matmul %53, %54, %cst_25 {dimension_numbers = #tpu.dot_dimension_numbers<[1], [1], [0], [0], [0, 0, 1, 0], [], []>} : vector<8x8xf32>, vector<8x8xf32>, vector<8x8xf32> -> vector<8x8xf32>
    %56 = vector.extract_strided_slice %37 {offsets = [8, 16], sizes = [8, 8], strides = [1, 1]} : vector<16x96xf32> to vector<8x8xf32>
    %57 = vector.extract_strided_slice %37 {offsets = [8, 48], sizes = [8, 8], strides = [1, 1]} : vector<16x96xf32> to vector<8x8xf32>
    %cst_26 = arith.constant dense<0.000000e+00> : vector<8x8xf32>
    %58 = tpu.matmul %56, %57, %cst_26 {dimension_numbers = #tpu.dot_dimension_numbers<[1], [1], [0], [0], [0, 0, 1, 0], [], []>} : vector<8x8xf32>, vector<8x8xf32>, vector<8x8xf32> -> vector<8x8xf32>
    %59 = vector.extract_strided_slice %37 {offsets = [8, 24], sizes = [8, 8], strides = [1, 1]} : vector<16x96xf32> to vector<8x8xf32>
    %60 = vector.extract_strided_slice %37 {offsets = [8, 56], sizes = [8, 8], strides = [1, 1]} : vector<16x96xf32> to vector<8x8xf32>
    %cst_27 = arith.constant dense<0.000000e+00> : vector<8x8xf32>
    %61 = tpu.matmul %59, %60, %cst_27 {dimension_numbers = #tpu.dot_dimension_numbers<[1], [1], [0], [0], [0, 0, 1, 0], [], []>} : vector<8x8xf32>, vector<8x8xf32>, vector<8x8xf32> -> vector<8x8xf32>
    %62 = tpu.concatenate %40, %43, %46, %49, %52, %55, %58, %61 in 0 : vector<8x8xf32>, vector<8x8xf32>, vector<8x8xf32>, vector<8x8xf32>, vector<8x8xf32>, vector<8x8xf32>, vector<8x8xf32>, vector<8x8xf32> -> vector<64x8xf32>
    %c0_28 = arith.constant 0 : index
    %c0_29 = arith.constant 0 : index
    %63 = vector.load %arg1[%c0_28, %c0_29] : memref<64x8xf32, #tpu.memory_space<vmem>>, vector<64x8xf32>
    %64 = arith.addf %62, %63 : vector<64x8xf32>
    %cst_30 = arith.constant dense<0xFF800000> : vector<64xf32>
    %65 = vector.multi_reduction <maximumf>, %64, %cst_30 [1] : vector<64x8xf32> to vector<64xf32>
    %66 = vector.shape_cast %65 : vector<64xf32> to vector<64x1xf32>
    %67 = vector.broadcast %66 : vector<64x1xf32> to vector<64x8xf32>
    %68 = arith.subf %64, %67 : vector<64x8xf32>
    %69 = math.exp %68 : vector<64x8xf32>
    %cst_31 = arith.constant dense<0.000000e+00> : vector<64xf32>
    %70 = vector.multi_reduction <add>, %69, %cst_31 [1] : vector<64x8xf32> to vector<64xf32>
    %71 = vector.shape_cast %70 : vector<64xf32> to vector<64x1xf32>
    %72 = tpu.reciprocal %71 {approx = true} : vector<64x1xf32> -> vector<64x1xf32>
    %73 = vector.broadcast %72 : vector<64x1xf32> to vector<64x8xf32>
    %74 = arith.mulf %69, %73 : vector<64x8xf32>
    %75 = vector.extract_strided_slice %74 {offsets = [0, 0], sizes = [8, 8], strides = [1, 1]} : vector<64x8xf32> to vector<8x8xf32>
    %76 = vector.extract_strided_slice %37 {offsets = [0, 64], sizes = [8, 8], strides = [1, 1]} : vector<16x96xf32> to vector<8x8xf32>
    %cst_32 = arith.constant dense<0.000000e+00> : vector<8x8xf32>
    %77 = tpu.matmul %75, %76, %cst_32 {dimension_numbers = #tpu.dot_dimension_numbers<[1], [0], [0], [1], [0, 0, 1, 1], [], []>} : vector<8x8xf32>, vector<8x8xf32>, vector<8x8xf32> -> vector<8x8xf32>
    %78 = vector.extract_strided_slice %10 {offsets = [0, 0], sizes = [8, 32], strides = [1, 1]} : vector<32x32xf32> to vector<8x32xf32>
    %cst_33 = arith.constant dense<0.000000e+00> : vector<8x32xf32>
    %79 = tpu.matmul %77, %78, %cst_33 {dimension_numbers = #tpu.dot_dimension_numbers<[1], [0], [0], [1], [0, 0, 1, 1], [], []>} : vector<8x8xf32>, vector<8x32xf32>, vector<8x32xf32> -> vector<8x32xf32>
    %80 = vector.extract_strided_slice %74 {offsets = [8, 0], sizes = [8, 8], strides = [1, 1]} : vector<64x8xf32> to vector<8x8xf32>
    %81 = vector.extract_strided_slice %37 {offsets = [0, 72], sizes = [8, 8], strides = [1, 1]} : vector<16x96xf32> to vector<8x8xf32>
    %cst_34 = arith.constant dense<0.000000e+00> : vector<8x8xf32>
    %82 = tpu.matmul %80, %81, %cst_34 {dimension_numbers = #tpu.dot_dimension_numbers<[1], [0], [0], [1], [0, 0, 1, 1], [], []>} : vector<8x8xf32>, vector<8x8xf32>, vector<8x8xf32> -> vector<8x8xf32>
    %83 = vector.extract_strided_slice %10 {offsets = [8, 0], sizes = [8, 32], strides = [1, 1]} : vector<32x32xf32> to vector<8x32xf32>
    %cst_35 = arith.constant dense<0.000000e+00> : vector<8x32xf32>
    %84 = tpu.matmul %82, %83, %cst_35 {dimension_numbers = #tpu.dot_dimension_numbers<[1], [0], [0], [1], [0, 0, 1, 1], [], []>} : vector<8x8xf32>, vector<8x32xf32>, vector<8x32xf32> -> vector<8x32xf32>
    %85 = arith.addf %79, %84 : vector<8x32xf32>
    %86 = vector.extract_strided_slice %74 {offsets = [16, 0], sizes = [8, 8], strides = [1, 1]} : vector<64x8xf32> to vector<8x8xf32>
    %87 = vector.extract_strided_slice %37 {offsets = [0, 80], sizes = [8, 8], strides = [1, 1]} : vector<16x96xf32> to vector<8x8xf32>
    %cst_36 = arith.constant dense<0.000000e+00> : vector<8x8xf32>
    %88 = tpu.matmul %86, %87, %cst_36 {dimension_numbers = #tpu.dot_dimension_numbers<[1], [0], [0], [1], [0, 0, 1, 1], [], []>} : vector<8x8xf32>, vector<8x8xf32>, vector<8x8xf32> -> vector<8x8xf32>
    %89 = vector.extract_strided_slice %10 {offsets = [16, 0], sizes = [8, 32], strides = [1, 1]} : vector<32x32xf32> to vector<8x32xf32>
    %cst_37 = arith.constant dense<0.000000e+00> : vector<8x32xf32>
    %90 = tpu.matmul %88, %89, %cst_37 {dimension_numbers = #tpu.dot_dimension_numbers<[1], [0], [0], [1], [0, 0, 1, 1], [], []>} : vector<8x8xf32>, vector<8x32xf32>, vector<8x32xf32> -> vector<8x32xf32>
    %91 = arith.addf %85, %90 : vector<8x32xf32>
    %92 = vector.extract_strided_slice %74 {offsets = [24, 0], sizes = [8, 8], strides = [1, 1]} : vector<64x8xf32> to vector<8x8xf32>
    %93 = vector.extract_strided_slice %37 {offsets = [0, 88], sizes = [8, 8], strides = [1, 1]} : vector<16x96xf32> to vector<8x8xf32>
    %cst_38 = arith.constant dense<0.000000e+00> : vector<8x8xf32>
    %94 = tpu.matmul %92, %93, %cst_38 {dimension_numbers = #tpu.dot_dimension_numbers<[1], [0], [0], [1], [0, 0, 1, 1], [], []>} : vector<8x8xf32>, vector<8x8xf32>, vector<8x8xf32> -> vector<8x8xf32>
    %95 = vector.extract_strided_slice %10 {offsets = [24, 0], sizes = [8, 32], strides = [1, 1]} : vector<32x32xf32> to vector<8x32xf32>
    %cst_39 = arith.constant dense<0.000000e+00> : vector<8x32xf32>
    %96 = tpu.matmul %94, %95, %cst_39 {dimension_numbers = #tpu.dot_dimension_numbers<[1], [0], [0], [1], [0, 0, 1, 1], [], []>} : vector<8x8xf32>, vector<8x32xf32>, vector<8x32xf32> -> vector<8x32xf32>
    %97 = arith.addf %91, %96 : vector<8x32xf32>
    %98 = vector.extract_strided_slice %74 {offsets = [32, 0], sizes = [8, 8], strides = [1, 1]} : vector<64x8xf32> to vector<8x8xf32>
    %99 = vector.extract_strided_slice %37 {offsets = [8, 64], sizes = [8, 8], strides = [1, 1]} : vector<16x96xf32> to vector<8x8xf32>
    %cst_40 = arith.constant dense<0.000000e+00> : vector<8x8xf32>
    %100 = tpu.matmul %98, %99, %cst_40 {dimension_numbers = #tpu.dot_dimension_numbers<[1], [0], [0], [1], [0, 0, 1, 1], [], []>} : vector<8x8xf32>, vector<8x8xf32>, vector<8x8xf32> -> vector<8x8xf32>
    %101 = vector.extract_strided_slice %10 {offsets = [0, 0], sizes = [8, 32], strides = [1, 1]} : vector<32x32xf32> to vector<8x32xf32>
    %cst_41 = arith.constant dense<0.000000e+00> : vector<8x32xf32>
    %102 = tpu.matmul %100, %101, %cst_41 {dimension_numbers = #tpu.dot_dimension_numbers<[1], [0], [0], [1], [0, 0, 1, 1], [], []>} : vector<8x8xf32>, vector<8x32xf32>, vector<8x32xf32> -> vector<8x32xf32>
    %103 = vector.extract_strided_slice %74 {offsets = [40, 0], sizes = [8, 8], strides = [1, 1]} : vector<64x8xf32> to vector<8x8xf32>
    %104 = vector.extract_strided_slice %37 {offsets = [8, 72], sizes = [8, 8], strides = [1, 1]} : vector<16x96xf32> to vector<8x8xf32>
    %cst_42 = arith.constant dense<0.000000e+00> : vector<8x8xf32>
    %105 = tpu.matmul %103, %104, %cst_42 {dimension_numbers = #tpu.dot_dimension_numbers<[1], [0], [0], [1], [0, 0, 1, 1], [], []>} : vector<8x8xf32>, vector<8x8xf32>, vector<8x8xf32> -> vector<8x8xf32>
    %106 = vector.extract_strided_slice %10 {offsets = [8, 0], sizes = [8, 32], strides = [1, 1]} : vector<32x32xf32> to vector<8x32xf32>
    %cst_43 = arith.constant dense<0.000000e+00> : vector<8x32xf32>
    %107 = tpu.matmul %105, %106, %cst_43 {dimension_numbers = #tpu.dot_dimension_numbers<[1], [0], [0], [1], [0, 0, 1, 1], [], []>} : vector<8x8xf32>, vector<8x32xf32>, vector<8x32xf32> -> vector<8x32xf32>
    %108 = arith.addf %102, %107 : vector<8x32xf32>
    %109 = vector.extract_strided_slice %74 {offsets = [48, 0], sizes = [8, 8], strides = [1, 1]} : vector<64x8xf32> to vector<8x8xf32>
    %110 = vector.extract_strided_slice %37 {offsets = [8, 80], sizes = [8, 8], strides = [1, 1]} : vector<16x96xf32> to vector<8x8xf32>
    %cst_44 = arith.constant dense<0.000000e+00> : vector<8x8xf32>
    %111 = tpu.matmul %109, %110, %cst_44 {dimension_numbers = #tpu.dot_dimension_numbers<[1], [0], [0], [1], [0, 0, 1, 1], [], []>} : vector<8x8xf32>, vector<8x8xf32>, vector<8x8xf32> -> vector<8x8xf32>
    %112 = vector.extract_strided_slice %10 {offsets = [16, 0], sizes = [8, 32], strides = [1, 1]} : vector<32x32xf32> to vector<8x32xf32>
    %cst_45 = arith.constant dense<0.000000e+00> : vector<8x32xf32>
    %113 = tpu.matmul %111, %112, %cst_45 {dimension_numbers = #tpu.dot_dimension_numbers<[1], [0], [0], [1], [0, 0, 1, 1], [], []>} : vector<8x8xf32>, vector<8x32xf32>, vector<8x32xf32> -> vector<8x32xf32>
    %114 = arith.addf %108, %113 : vector<8x32xf32>
    %115 = vector.extract_strided_slice %74 {offsets = [56, 0], sizes = [8, 8], strides = [1, 1]} : vector<64x8xf32> to vector<8x8xf32>
    %116 = vector.extract_strided_slice %37 {offsets = [8, 88], sizes = [8, 8], strides = [1, 1]} : vector<16x96xf32> to vector<8x8xf32>
    %cst_46 = arith.constant dense<0.000000e+00> : vector<8x8xf32>
    %117 = tpu.matmul %115, %116, %cst_46 {dimension_numbers = #tpu.dot_dimension_numbers<[1], [0], [0], [1], [0, 0, 1, 1], [], []>} : vector<8x8xf32>, vector<8x8xf32>, vector<8x8xf32> -> vector<8x8xf32>
    %118 = vector.extract_strided_slice %10 {offsets = [24, 0], sizes = [8, 32], strides = [1, 1]} : vector<32x32xf32> to vector<8x32xf32>
    %cst_47 = arith.constant dense<0.000000e+00> : vector<8x32xf32>
    %119 = tpu.matmul %117, %118, %cst_47 {dimension_numbers = #tpu.dot_dimension_numbers<[1], [0], [0], [1], [0, 0, 1, 1], [], []>} : vector<8x8xf32>, vector<8x32xf32>, vector<8x32xf32> -> vector<8x32xf32>
    %120 = arith.addf %114, %119 : vector<8x32xf32>
    %121 = tpu.concatenate %97, %120 in 0 : vector<8x32xf32>, vector<8x32xf32> -> vector<16x32xf32>
    %122 = arith.addf %0, %121 : vector<16x32xf32>
    %123 = vector.broadcast %4 : vector<1x32xf32> to vector<16x32xf32>
    %124 = arith.addf %122, %123 : vector<16x32xf32>
    %cst_48 = arith.constant dense<0.000000e+00> : vector<16xf32>
    %125 = vector.multi_reduction <add>, %124, %cst_48 [1] : vector<16x32xf32> to vector<16xf32>
    %126 = vector.shape_cast %125 : vector<16xf32> to vector<16x1xf32>
    %cst_49 = arith.constant 3.200000e+01 : f32
    %127 = vector.broadcast %cst_49 : f32 to vector<16x1xf32>
    %128 = arith.divf %126, %127 : vector<16x1xf32>
    %129 = vector.broadcast %128 : vector<16x1xf32> to vector<16x32xf32>
    %130 = arith.subf %124, %129 : vector<16x32xf32>
    %131 = arith.mulf %130, %130 : vector<16x32xf32>
    %cst_50 = arith.constant dense<0.000000e+00> : vector<16xf32>
    %132 = vector.multi_reduction <add>, %131, %cst_50 [1] : vector<16x32xf32> to vector<16xf32>
    %133 = vector.shape_cast %132 : vector<16xf32> to vector<16x1xf32>
    %cst_51 = arith.constant 0.0322580636 : f32
    %134 = vector.broadcast %cst_51 : f32 to vector<16x1xf32>
    %135 = arith.mulf %133, %134 : vector<16x1xf32>
    %136 = math.sqrt %135 : vector<16x1xf32>
    %137 = vector.broadcast %128 : vector<16x1xf32> to vector<16x32xf32>
    %138 = arith.subf %124, %137 : vector<16x32xf32>
    %139 = vector.broadcast %5 : vector<1x32xf32> to vector<16x32xf32>
    %140 = arith.mulf %139, %138 : vector<16x32xf32>
    %cst_52 = arith.constant 9.99999997E-7 : f32
    %141 = vector.broadcast %cst_52 : f32 to vector<16x1xf32>
    %142 = arith.addf %136, %141 : vector<16x1xf32>
    %143 = vector.broadcast %142 : vector<16x1xf32> to vector<16x32xf32>
    %144 = arith.divf %140, %143 : vector<16x32xf32>
    %145 = vector.broadcast %6 : vector<1x32xf32> to vector<16x32xf32>
    %146 = arith.addf %144, %145 : vector<16x32xf32>
    %cst_53 = arith.constant dense<0.000000e+00> : vector<16x64xf32>
    %147 = tpu.matmul %146, %11, %cst_53 {dimension_numbers = #tpu.dot_dimension_numbers<[1], [0], [0], [1], [0, 0, 1, 1], [], []>} : vector<16x32xf32>, vector<32x64xf32>, vector<16x64xf32> -> vector<16x64xf32>
    %148 = vector.broadcast %7 : vector<1x64xf32> to vector<16x64xf32>
    %149 = arith.addf %147, %148 : vector<16x64xf32>
    %cst_54 = arith.constant 0.000000e+00 : f32
    %150 = vector.broadcast %cst_54 : f32 to vector<16x64xf32>
    %151 = arith.maximumf %149, %150 : vector<16x64xf32>
    %cst_55 = arith.constant dense<0.000000e+00> : vector<16x32xf32>
    %152 = tpu.matmul %151, %12, %cst_55 {dimension_numbers = #tpu.dot_dimension_numbers<[1], [0], [0], [1], [0, 0, 1, 1], [], []>} : vector<16x64xf32>, vector<64x32xf32>, vector<16x32xf32> -> vector<16x32xf32>
    %153 = vector.broadcast %8 : vector<1x32xf32> to vector<16x32xf32>
    %154 = arith.addf %152, %153 : vector<16x32xf32>
    %155 = arith.addf %124, %154 : vector<16x32xf32>
    %c0_56 = arith.constant 0 : index
    %c0_57 = arith.constant 0 : index
    %156 = vector.load %arg4[%c0_56, %c0_57] : memref<16x32xf32, #tpu.memory_space<vmem>>, vector<16x32xf32>
    tpu.vector_store %arg4[%c0_56, %c0_57], %155 {strides = array<i32>} : memref<16x32xf32, #tpu.memory_space<vmem>>, vector<16x32xf32>,
    return
  }
}

</mosaic_0001>

<llo_original>
// kernel: encoder_layer_pallas.1
$region0: #{encoder_layer_pallas.1}
  #allocation0 [shape = 'u32[]', space=smem, size = 0x4, offset = 0x4, fixed_abs, tag = 'smem constant byte address 0x4 - core index']
  #allocation1 [shape = 'u32[144,128]{1,0:T(1,128)}', space=vmem, size = 0x12000, scoped, tag = 'internal scratch']
  %s0 = inlined_call_operand.vmem [shape: f32[16,32], index: 0, kind: input, shape index: {}]
  %s1 = inlined_call_operand.vmem [shape: f32[64,8], index: 1, kind: input, shape index: {}]
  %s2 = inlined_call_operand.vmem [shape: f32[8,128], index: 2, kind: input, shape index: {}]
  %s3 = inlined_call_operand.hbm [shape: f32[160,128], index: 3, kind: input, shape index: {}]
  %s4 = inlined_call_operand.hbm [shape: f32[16,32], index: 4, kind: output, shape index: {}]
  %s5 = sld [smem:[#allocation0]]
  $region30: #{encoder_layer_pallas.1} parent=0
    _
  %s7 = ssub.s32 1, %s5
  %s8 = scalar_select 0, %s7, %s5
  $region1: #{encoder_layer_pallas.1} parent=0
    #allocation2 [shape = 'u8[81920]{0}', space=vmem, size = 0x14000, scoped, tag = 'input window, operand 3, single buffered']
    #allocation3 [shape = 's32[1]{0}', space=sflag, size = 0x4, scoped, tag = 'scoped memory for encoder_layer_pallas.1']
    #allocation4 [shape = 's32[1]{0}', space=sflag, size = 0x4, scoped, tag = 'scoped memory for encoder_layer_pallas.1']
    #allocation5 [shape = 'u8[8192]{0}', space=vmem, size = 0x2000, scoped, tag = 'output window, operand 0, single buffered']
    %9 = vsyncpa [#allocation3], 0
    %10 = vsyncpa [#allocation4], 0
    // Predicated region
    $region2: #{encoder_layer_pallas.1} parent=1 // pred_check
      _
    $region3: #{encoder_layer_pallas.1} parent=1 // pred_check_branch
      %12 = sbr.rel (0) target = $region5
    $region4: #{encoder_layer_pallas.1} parent=1 // pred_region
      _
    $region5: #{encoder_layer_pallas.1} parent=1 // pred_fallthru
      _
    // Predicated region
    $region6: #{encoder_layer_pallas.1} parent=1 // pred_check
      _
    $region7: #{encoder_layer_pallas.1} parent=1 // pred_check_branch
      %14 = sbr.rel (0) target = $region9
    $region8: #{encoder_layer_pallas.1} parent=1 // pred_region
      _
    $region9: #{encoder_layer_pallas.1} parent=1 // pred_fallthru
      _
    // Predicated region
    $region10: #{encoder_layer_pallas.1} parent=1 // pred_check
      _
    $region11: #{encoder_layer_pallas.1} parent=1 // pred_check_branch
      %16 = sbr.rel (0) target = $region13
    $region12: #{encoder_layer_pallas.1} parent=1 // pred_region
      _
    $region13: #{encoder_layer_pallas.1} parent=1 // pred_fallthru
      _
    // Predicated region
    $region14: #{encoder_layer_pallas.1} parent=1 // pred_check
      _
    $region15: #{encoder_layer_pallas.1} parent=1 // pred_check_branch
      %18 = sbr.rel (0) target = $region17
    $region16: #{encoder_layer_pallas.1} parent=1 // pred_region
      %s20 = ssub.s32 2560, 2560
      %21 = vsyncadd [#allocation3], %s20
      %s22 = sshll.u32 [#allocation2], 4
      %s23 = int_to_ptr.vmem [resolvable:$true] %s22
      %28 = dma.hbm_to_vmem [thread:$0]  %s3, 2560, %s23, [#allocation3], 128, 128, 8
    $region17: #{encoder_layer_pallas.1} parent=1 // pred_fallthru
      _
    // Predicated region
    $region18: #{encoder_layer_pallas.1} parent=1 // pred_check
      _
    $region19: #{encoder_layer_pallas.1} parent=1 // pred_check_branch
      %30 = sbr.rel (0) target = $region21
    $region20: #{encoder_layer_pallas.1} parent=1 // pred_region
      %31 = dma.done [#allocation3], 2560
    $region21: #{encoder_layer_pallas.1} parent=1 // pred_fallthru
      _
    %v32 = vld [vmem:[%s0] sm:$0xff]
    %v33 = vld [vmem:[%s0 + $0x8] sm:$0xff]
    %v34 = vld [vmem:[%s2] sm:$0x1]
    %v35 = vld [vmem:[%s2 + $0x1] sm:$0x1]
    %v36 = vld [vmem:[%s2 + $0x2] sm:$0x1]
    %v37 = vld [vmem:[%s2 + $0x3] sm:$0x1]
    %v38 = vld [vmem:[%s2 + $0x4] sm:$0x1]
    %v39 = vld [vmem:[%s2 + $0x5] sm:$0x1]
    %v40 = vld [vmem:[%s2 + $0x6] sm:$0x1]
    %v41 = vld [vmem:[%s2 + $0x7] sm:$0x1]
    %v42 = vld [vmem:[#allocation2] sm:$0xff]
    %v43 = vld [vmem:[#allocation2 + $0x8] sm:$0xff]
    %v44 = vld [vmem:[#allocation2 + $0x10] sm:$0xff]
    %v45 = vld [vmem:[#allocation2 + $0x18] sm:$0xff]
    %v46 = vld [vmem:[#allocation2 + $0x20] sm:$0xff]
    %v47 = vld [vmem:[#allocation2 + $0x28] sm:$0xff]
    %v48 = vld [vmem:[#allocation2 + $0x30] sm:$0xff]
    %v49 = vld [vmem:[#allocation2 + $0x38] sm:$0xff]
    %v50 = vld [vmem:[#allocation2 + $0x40] sm:$0xff]
    %v51 = vld [vmem:[#allocation2 + $0x48] sm:$0xff]
    %v52 = vld [vmem:[#allocation2 + $0x50] sm:$0xff]
    %v53 = vld [vmem:[#allocation2 + $0x58] sm:$0xff]
    %v54 = vld [vmem:[#allocation2 + $0x60] sm:$0xff]
    %v55 = vld [vmem:[#allocation2 + $0x68] sm:$0xff]
    %v56 = vld [vmem:[#allocation2 + $0x70] sm:$0xff]
    %v57 = vld [vmem:[#allocation2 + $0x78] sm:$0xff]
    %v58 = vld [vmem:[#allocation2 + $0x80] sm:$0xff]
    %v59 = vld [vmem:[#allocation2 + $0x88] sm:$0xff]
    %v60 = vld [vmem:[#allocation2 + $0x90] sm:$0xff]
    %v61 = vld [vmem:[#allocation2 + $0x98] sm:$0xff]
    %vm62 = vcmask 261120
    %v63 = vsel %vm62, %v32, 0.0
    %64 = vadd.xlane.f32.xlu0 %v63
    %v65 = vpop.xlane.xlu0 %64
    %v66 = vsel %vm62, %v33, 0.0
    %67 = vadd.xlane.f32.xlu0 %v66
    %v68 = vpop.xlane.xlu0 %67
    %v69 = vrcp.pop 32.0
    %v70 = vmul.f32 %v65, %v69
    %v71 = vmul.f32 %v68, %v69
    %v72 = vsub.f32 %v32, %v70
    %v73 = vsub.f32 %v33, %v71
    %v74 = vmul.f32 %v72, %v72
    %v75 = vmul.f32 %v73, %v73
    %v76 = vsel %vm62, %v74, 0.0
    %77 = vadd.xlane.f32.xlu0 %v76
    %v78 = vpop.xlane.xlu0 %77
    %v79 = vsel %vm62, %v75, 0.0
    %80 = vadd.xlane.f32.xlu0 %v79
    %v81 = vpop.xlane.xlu0 %80
    %v82 = vmul.f32 %v78, 0.032258064
    %v83 = vmul.f32 %v81, 0.032258064
    %v84 = vrsqrt.pop %v82
    %v85 = vmul.f32 %v82, %v84
    %vm86 = vcmp.eq.f32.partialorder %v82, inf
    %v87 = vsel %vm86, %v82, %v85
    %vm88 = vcmp.eq.f32.partialorder %v82, 0.0
    %v89 = vand.u32 %v82, 2147483648
    %v90 = vsel %vm88, %v89, %v87
    %v91 = vrsqrt.pop %v83
    %v92 = vmul.f32 %v83, %v91
    %vm93 = vcmp.eq.f32.partialorder %v83, inf
    %v94 = vsel %vm93, %v83, %v92
    %vm95 = vcmp.eq.f32.partialorder %v83, 0.0
    %v96 = vand.u32 %v83, 2147483648
    %v97 = vsel %vm95, %v96, %v94
    %v98 = vlaneseq
    %v99 = vshrl.u32 %v98, 7
    %v100 = vsub.s32 0, %v99
    %v101 = vrot.slane %v34, %v100
    %v102 = vmul.f32 %v101, %v72
    %v103 = vmul.f32 %v101, %v73
    %v104 = vadd.f32 %v90, 1e-06
    %v105 = vadd.f32 %v97, 1e-06
    %v106 = vrcp.pop %v104
    %v107 = vmul.f32 %v102, %v106
    %v108 = vrcp.pop %v105
    %v109 = vmul.f32 %v103, %v108
    %v110 = vlaneseq
    %v111 = vshrl.u32 %v110, 7
    %v112 = vsub.s32 0, %v111
    %v113 = vrot.slane %v35, %v112
    %v114 = vadd.f32 %v107, %v113
    %v115 = vadd.f32 %v109, %v113
    %v116 = vlaneseq
    %v117 = vshrl.u32 %v116, 7
    %v118 = vsub.s32 0, %v117
    %v119 = vrot.slane %v36, %v118
    %v121 = vsel %vm62, %v114, 0
    %v124 = vsel %vm62, %v115, 0
    %126 = vmatprep.subr.mxu0 0.0
    %127 = vmatpush1.msra.mxu0 %v42
    %128 = vmatprep.subr.mxu0 0.0
    %129 = vmatpush1.msra.mxu0 %v43
    %130 = vmatprep.subr.mxu0 0.0
    %131 = vmatpush1.msra.mxu0 %v44
    %132 = vmatprep.subr.mxu0 0.0
    %133 = vmatpush1.msra.mxu0 %v45
    %134 = vmatprep.subr.mxu0 0.0
    %135 = vmatpush1.msra.mxu0 0.0
    %136 = vmatprep.subr.mxu0 0.0
    %137 = vmatpush1.msra.mxu0 0.0
    %138 = vmatprep.subr.mxu0 0.0
    %139 = vmatpush1.msra.mxu0 0.0
    %140 = vmatprep.subr.mxu0 0.0
    %141 = vmatpush1.msra.mxu0 0.0
    %142 = vmatprep.subr.mxu0 0.0
    %143 = vmatpush1.msra.mxu0 0.0
    %144 = vmatprep.subr.mxu0 0.0
    %145 = vmatpush1.msra.mxu0 0.0
    %146 = vmatprep.subr.mxu0 0.0
    %147 = vmatpush1.msra.mxu0 0.0
    %148 = vmatprep.subr.mxu0 0.0
    %149 = vmatpush1.msra.mxu0 0.0
    %150 = vmatprep.subr.mxu0 0.0
    %151 = vmatpush1.msra.mxu0 0.0
    %152 = vmatprep.subr.mxu0 0.0
    %153 = vmatpush1.msra.mxu0 0.0
    %154 = vmatprep.subr.mxu0 0.0
    %155 = vmatpush1.msra.mxu0 0.0
    %156 = vmatprep.subr.mxu0 0.0
    %157 = vmatpush1.msra.mxu0 0.0
    %158 = vmatprep.subr.mxu0 0.0
    %159 = vmatpush1.msra.mxu0 0.0
    %160 = vmatprep.subr.mxu0 0.0
    %161 = vmatpush1.msra.mxu0 0.0
    %162 = vmatprep.subr.mxu0 0.0
    %163 = vmatpush1.msra.mxu0 0.0
    %164 = vmatprep.subr.mxu0 0.0
    %165 = vmatpush1.msra.mxu0 0.0
    %166 = vmatprep.subr.mxu0 0.0
    %167 = vmatpush1.msra.mxu0 0.0
    %168 = vmatprep.subr.mxu0 0.0
    %169 = vmatpush1.msra.mxu0 0.0
    %170 = vmatprep.subr.mxu0 0.0
    %171 = vmatpush1.msra.mxu0 0.0
    %172 = vmatprep.subr.mxu0 0.0
    %173 = vmatpush1.msra.mxu0 0.0
    %174 = vmatprep.subr.mxu0 0.0
    %175 = vmatpush1.msra.mxu0 0.0
    %176 = vmatprep.subr.mxu0 0.0
    %177 = vmatpush1.msra.mxu0 0.0
    %178 = vmatprep.subr.mxu0 0.0
    %179 = vmatpush1.msra.mxu0 0.0
    %180 = vmatprep.subr.mxu0 0.0
    %181 = vmatpush1.msra.mxu0 0.0
    %182 = vmatprep.subr.mxu0 0.0
    %183 = vmatpush1.msra.mxu0 0.0
    %184 = vmatprep.subr.mxu0 0.0
    %185 = vmatpush1.msra.mxu0 0.0
    %186 = vmatprep.subr.mxu0 0.0
    %187 = vmatpush1.msra.mxu0 0.0
    %188 = vmatprep.subr.mxu0 0.0
    %189 = vmatpush1.msra.mxu0 0.0
    %190 = vmatprep.mubr.f32.mxu0 0.0
    %191 = vmatmul.mubr.f32.gmra.mrb[0].mxu0 %v121
    %v192 = vpop.f32.mrb[0].mxu0
    %v193 = vadd.f32 %v119, %v192
    %v194 = vpop.f32.mrb[0].mxu0
    %195 = vmatprep.mubr.f32.mxu0 0.0
    %196 = vmatmul.mubr.f32.gmra.mrb[0].mxu0 %v124
    %v197 = vpop.f32.mrb[0].mxu0
    %v198 = vadd.f32 %v119, %v197
    %v199 = vpop.f32.mrb[0].mxu0
    %200 = vdwg.mxu0
    %202 = vrot.lane.b32.xlu0 %v193, 96
    %v203 = vpop.permute.xlu0 %202
    %vm204 = vcmask 64512
    %v205 = vsel %vm204, %v193, 0
    %v207 = vsel %vm204, %v203, 0
    %209 = vmatprep.subr.mxu0 0.0
    %210 = vmatpush1.xpose.msra.mxu0 %v207
    %211 = vmatprep.subr.mxu0 0.0
    %212 = vmatpush1.xpose.msra.mxu0 0.0
    %213 = vmatprep.subr.mxu0 0.0
    %214 = vmatpush1.xpose.msra.mxu0 0.0
    %215 = vmatprep.subr.mxu0 0.0
    %216 = vmatpush1.xpose.msra.mxu0 0.0
    %217 = vmatprep.subr.mxu0 0.0
    %218 = vmatpush1.xpose.msra.mxu0 0.0
    %219 = vmatprep.subr.mxu0 0.0
    %220 = vmatpush1.xpose.msra.mxu0 0.0
    %221 = vmatprep.subr.mxu0 0.0
    %222 = vmatpush1.xpose.msra.mxu0 0.0
    %223 = vmatprep.subr.mxu0 0.0
    %224 = vmatpush1.xpose.msra.mxu0 0.0
    %225 = vmatprep.subr.mxu0 0.0
    %226 = vmatpush1.xpose.msra.mxu0 0.0
    %227 = vmatprep.subr.mxu0 0.0
    %228 = vmatpush1.xpose.msra.mxu0 0.0
    %229 = vmatprep.subr.mxu0 0.0
    %230 = vmatpush1.xpose.msra.mxu0 0.0
    %231 = vmatprep.subr.mxu0 0.0
    %232 = vmatpush1.xpose.msra.mxu0 0.0
    %233 = vmatprep.subr.mxu0 0.0
    %234 = vmatpush1.xpose.msra.mxu0 0.0
    %235 = vmatprep.subr.mxu0 0.0
    %236 = vmatpush1.xpose.msra.mxu0 0.0
    %237 = vmatprep.subr.mxu0 0.0
    %238 = vmatpush1.xpose.msra.mxu0 0.0
    %239 = vmatprep.subr.mxu0 0.0
    %240 = vmatpush1.xpose.msra.mxu0 0.0
    %241 = vmatprep.subr.mxu0 0.0
    %242 = vmatpush1.xpose.msra.mxu0 0.0
    %243 = vmatprep.subr.mxu0 0.0
    %244 = vmatpush1.xpose.msra.mxu0 0.0
    %245 = vmatprep.subr.mxu0 0.0
    %246 = vmatpush1.xpose.msra.mxu0 0.0
    %247 = vmatprep.subr.mxu0 0.0
    %248 = vmatpush1.xpose.msra.mxu0 0.0
    %249 = vmatprep.subr.mxu0 0.0
    %250 = vmatpush1.xpose.msra.mxu0 0.0
    %251 = vmatprep.subr.mxu0 0.0
    %252 = vmatpush1.xpose.msra.mxu0 0.0
    %253 = vmatprep.subr.mxu0 0.0
    %254 = vmatpush1.xpose.msra.mxu0 0.0
    %255 = vmatprep.subr.mxu0 0.0
    %256 = vmatpush1.xpose.msra.mxu0 0.0
    %257 = vmatprep.subr.mxu0 0.0
    %258 = vmatpush1.xpose.msra.mxu0 0.0
    %259 = vmatprep.subr.mxu0 0.0
    %260 = vmatpush1.xpose.msra.mxu0 0.0
    %261 = vmatprep.subr.mxu0 0.0
    %262 = vmatpush1.xpose.msra.mxu0 0.0
    %263 = vmatprep.subr.mxu0 0.0
    %264 = vmatpush1.xpose.msra.mxu0 0.0
    %265 = vmatprep.subr.mxu0 0.0
    %266 = vmatpush1.xpose.msra.mxu0 0.0
    %267 = vmatprep.subr.mxu0 0.0
    %268 = vmatpush1.xpose.msra.mxu0 0.0
    %269 = vmatprep.subr.mxu0 0.0
    %270 = vmatpush1.xpose.msra.mxu0 0.0
    %271 = vmatprep.subr.mxu0 0.0
    %272 = vmatpush1.xpose.msra.mxu0 0.0
    %273 = vmatprep.mubr.f32.mxu0 0.0
    %274 = vmatmul.mubr.f32.gmra.mrb[0].mxu0 %v205
    %v275 = vpop.f32.mrb[0].mxu0
    %v276 = vadd.f32 0.0, %v275
    %v277 = vpop.f32.mrb[0].mxu0
    %278 = vdwg.mxu0
    %279 = vrot.lane.b32.xlu0 %v193, 120
    %v280 = vpop.permute.xlu0 %279
    %281 = vrot.lane.b32.xlu0 %v193, 88
    %v282 = vpop.permute.xlu0 %281
    %v283 = vsel %vm204, %v280, 0
    %v285 = vsel %vm204, %v282, 0
    %287 = vmatprep.subr.mxu0 0.0
    %288 = vmatpush1.xpose.msra.mxu0 %v285
    %289 = vmatprep.subr.mxu0 0.0
    %290 = vmatpush1.xpose.msra.mxu0 0.0
    %291 = vmatprep.subr.mxu0 0.0
    %292 = vmatpush1.xpose.msra.mxu0 0.0
    %293 = vmatprep.subr.mxu0 0.0
    %294 = vmatpush1.xpose.msra.mxu0 0.0
    %295 = vmatprep.subr.mxu0 0.0
    %296 = vmatpush1.xpose.msra.mxu0 0.0
    %297 = vmatprep.subr.mxu0 0.0
    %298 = vmatpush1.xpose.msra.mxu0 0.0
    %299 = vmatprep.subr.mxu0 0.0
    %300 = vmatpush1.xpose.msra.mxu0 0.0
    %301 = vmatprep.subr.mxu0 0.0
    %302 = vmatpush1.xpose.msra.mxu0 0.0
    %303 = vmatprep.subr.mxu0 0.0
    %304 = vmatpush1.xpose.msra.mxu0 0.0
    %305 = vmatprep.subr.mxu0 0.0
    %306 = vmatpush1.xpose.msra.mxu0 0.0
    %307 = vmatprep.subr.mxu0 0.0
    %308 = vmatpush1.xpose.msra.mxu0 0.0
    %309 = vmatprep.subr.mxu0 0.0
    %310 = vmatpush1.xpose.msra.mxu0 0.0
    %311 = vmatprep.subr.mxu0 0.0
    %312 = vmatpush1.xpose.msra.mxu0 0.0
    %313 = vmatprep.subr.mxu0 0.0
    %314 = vmatpush1.xpose.msra.mxu0 0.0
    %315 = vmatprep.subr.mxu0 0.0
    %316 = vmatpush1.xpose.msra.mxu0 0.0
    %317 = vmatprep.subr.mxu0 0.0
    %318 = vmatpush1.xpose.msra.mxu0 0.0
    %319 = vmatprep.subr.mxu0 0.0
    %320 = vmatpush1.xpose.msra.mxu0 0.0
    %321 = vmatprep.subr.mxu0 0.0
    %322 = vmatpush1.xpose.msra.mxu0 0.0
    %323 = vmatprep.subr.mxu0 0.0
    %324 = vmatpush1.xpose.msra.mxu0 0.0
    %325 = vmatprep.subr.mxu0 0.0
    %326 = vmatpush1.xpose.msra.mxu0 0.0
    %327 = vmatprep.subr.mxu0 0.0
    %328 = vmatpush1.xpose.msra.mxu0 0.0
    %329 = vmatprep.subr.mxu0 0.0
    %330 = vmatpush1.xpose.msra.mxu0 0.0
    %331 = vmatprep.subr.mxu0 0.0
    %332 = vmatpush1.xpose.msra.mxu0 0.0
    %333 = vmatprep.subr.mxu0 0.0
    %334 = vmatpush1.xpose.msra.mxu0 0.0
    %335 = vmatprep.subr.mxu0 0.0
    %336 = vmatpush1.xpose.msra.mxu0 0.0
    %337 = vmatprep.subr.mxu0 0.0
    %338 = vmatpush1.xpose.msra.mxu0 0.0
    %339 = vmatprep.subr.mxu0 0.0
    %340 = vmatpush1.xpose.msra.mxu0 0.0
    %341 = vmatprep.subr.mxu0 0.0
    %342 = vmatpush1.xpose.msra.mxu0 0.0
    %343 = vmatprep.subr.mxu0 0.0
    %344 = vmatpush1.xpose.msra.mxu0 0.0
    %345 = vmatprep.subr.mxu0 0.0
    %346 = vmatpush1.xpose.msra.mxu0 0.0
    %347 = vmatprep.subr.mxu0 0.0
    %348 = vmatpush1.xpose.msra.mxu0 0.0
    %349 = vmatprep.subr.mxu0 0.0
    %350 = vmatpush1.xpose.msra.mxu0 0.0
    %351 = vmatprep.mubr.f32.mxu0 0.0
    %352 = vmatmul.mubr.f32.gmra.mrb[0].mxu0 %v283
    %v353 = vpop.f32.mrb[0].mxu0
    %v354 = vadd.f32 0.0, %v353
    %v355 = vpop.f32.mrb[0].mxu0
    %356 = vdwg.mxu0
    %357 = vrot.lane.b32.xlu0 %v193, 112
    %v358 = vpop.permute.xlu0 %357
    %359 = vrot.lane.b32.xlu0 %v193, 80
    %v360 = vpop.permute.xlu0 %359
    %v361 = vsel %vm204, %v358, 0
    %v363 = vsel %vm204, %v360, 0
    %365 = vmatprep.subr.mxu0 0.0
    %366 = vmatpush1.xpose.msra.mxu0 %v363
    %367 = vmatprep.subr.mxu0 0.0
    %368 = vmatpush1.xpose.msra.mxu0 0.0
    %369 = vmatprep.subr.mxu0 0.0
    %370 = vmatpush1.xpose.msra.mxu0 0.0
    %371 = vmatprep.subr.mxu0 0.0
    %372 = vmatpush1.xpose.msra.mxu0 0.0
    %373 = vmatprep.subr.mxu0 0.0
    %374 = vmatpush1.xpose.msra.mxu0 0.0
    %375 = vmatprep.subr.mxu0 0.0
    %376 = vmatpush1.xpose.msra.mxu0 0.0
    %377 = vmatprep.subr.mxu0 0.0
    %378 = vmatpush1.xpose.msra.mxu0 0.0
    %379 = vmatprep.subr.mxu0 0.0
    %380 = vmatpush1.xpose.msra.mxu0 0.0
    %381 = vmatprep.subr.mxu0 0.0
    %382 = vmatpush1.xpose.msra.mxu0 0.0
    %383 = vmatprep.subr.mxu0 0.0
    %384 = vmatpush1.xpose.msra.mxu0 0.0
    %385 = vmatprep.subr.mxu0 0.0
    %386 = vmatpush1.xpose.msra.mxu0 0.0
    %387 = vmatprep.subr.mxu0 0.0
    %388 = vmatpush1.xpose.msra.mxu0 0.0
    %389 = vmatprep.subr.mxu0 0.0
    %390 = vmatpush1.xpose.msra.mxu0 0.0
    %391 = vmatprep.subr.mxu0 0.0
    %392 = vmatpush1.xpose.msra.mxu0 0.0
    %393 = vmatprep.subr.mxu0 0.0
    %394 = vmatpush1.xpose.msra.mxu0 0.0
    %395 = vmatprep.subr.mxu0 0.0
    %396 = vmatpush1.xpose.msra.mxu0 0.0
    %397 = vmatprep.subr.mxu0 0.0
    %398 = vmatpush1.xpose.msra.mxu0 0.0
    %399 = vmatprep.subr.mxu0 0.0
    %400 = vmatpush1.xpose.msra.mxu0 0.0
    %401 = vmatprep.subr.mxu0 0.0
    %402 = vmatpush1.xpose.msra.mxu0 0.0
    %403 = vmatprep.subr.mxu0 0.0
    %404 = vmatpush1.xpose.msra.mxu0 0.0
    %405 = vmatprep.subr.mxu0 0.0
    %406 = vmatpush1.xpose.msra.mxu0 0.0
    %407 = vmatprep.subr.mxu0 0.0
    %408 = vmatpush1.xpose.msra.mxu0 0.0
    %409 = vmatprep.subr.mxu0 0.0
    %410 = vmatpush1.xpose.msra.mxu0 0.0
    %411 = vmatprep.subr.mxu0 0.0
    %412 = vmatpush1.xpose.msra.mxu0 0.0
    %413 = vmatprep.subr.mxu0 0.0
    %414 = vmatpush1.xpose.msra.mxu0 0.0
    %415 = vmatprep.subr.mxu0 0.0
    %416 = vmatpush1.xpose.msra.mxu0 0.0
    %417 = vmatprep.subr.mxu0 0.0
    %418 = vmatpush1.xpose.msra.mxu0 0.0
    %419 = vmatprep.subr.mxu0 0.0
    %420 = vmatpush1.xpose.msra.mxu0 0.0
    %421 = vmatprep.subr.mxu0 0.0
    %422 = vmatpush1.xpose.msra.mxu0 0.0
    %423 = vmatprep.subr.mxu0 0.0
    %424 = vmatpush1.xpose.msra.mxu0 0.0
    %425 = vmatprep.subr.mxu0 0.0
    %426 = vmatpush1.xpose.msra.mxu0 0.0
    %427 = vmatprep.subr.mxu0 0.0
    %428 = vmatpush1.xpose.msra.mxu0 0.0
    %429 = vmatprep.mubr.f32.mxu0 0.0
    %430 = vmatmul.mubr.f32.gmra.mrb[0].mxu0 %v361
    %v431 = vpop.f32.mrb[0].mxu0
    %v432 = vadd.f32 0.0, %v431
    %v433 = vpop.f32.mrb[0].mxu0
    %434 = vdwg.mxu0
    %435 = vrot.lane.b32.xlu0 %v193, 104
    %v436 = vpop.permute.xlu0 %435
    %437 = vrot.lane.b32.xlu0 %v193, 72
    %v438 = vpop.permute.xlu0 %437
    %v439 = vsel %vm204, %v436, 0
    %v441 = vsel %vm204, %v438, 0
    %443 = vmatprep.subr.mxu0 0.0
    %444 = vmatpush1.xpose.msra.mxu0 %v441
    %445 = vmatprep.subr.mxu0 0.0
    %446 = vmatpush1.xpose.msra.mxu0 0.0
    %447 = vmatprep.subr.mxu0 0.0
    %448 = vmatpush1.xpose.msra.mxu0 0.0
    %449 = vmatprep.subr.mxu0 0.0
    %450 = vmatpush1.xpose.msra.mxu0 0.0
    %451 = vmatprep.subr.mxu0 0.0
    %452 = vmatpush1.xpose.msra.mxu0 0.0
    %453 = vmatprep.subr.mxu0 0.0
    %454 = vmatpush1.xpose.msra.mxu0 0.0
    %455 = vmatprep.subr.mxu0 0.0
    %456 = vmatpush1.xpose.msra.mxu0 0.0
    %457 = vmatprep.subr.mxu0 0.0
    %458 = vmatpush1.xpose.msra.mxu0 0.0
    %459 = vmatprep.subr.mxu0 0.0
    %460 = vmatpush1.xpose.msra.mxu0 0.0
    %461 = vmatprep.subr.mxu0 0.0
    %462 = vmatpush1.xpose.msra.mxu0 0.0
    %463 = vmatprep.subr.mxu0 0.0
    %464 = vmatpush1.xpose.msra.mxu0 0.0
    %465 = vmatprep.subr.mxu0 0.0
    %466 = vmatpush1.xpose.msra.mxu0 0.0
    %467 = vmatprep.subr.mxu0 0.0
    %468 = vmatpush1.xpose.msra.mxu0 0.0
    %469 = vmatprep.subr.mxu0 0.0
    %470 = vmatpush1.xpose.msra.mxu0 0.0
    %471 = vmatprep.subr.mxu0 0.0
    %472 = vmatpush1.xpose.msra.mxu0 0.0
    %473 = vmatprep.subr.mxu0 0.0
    %474 = vmatpush1.xpose.msra.mxu0 0.0
    %475 = vmatprep.subr.mxu0 0.0
    %476 = vmatpush1.xpose.msra.mxu0 0.0
    %477 = vmatprep.subr.mxu0 0.0
    %478 = vmatpush1.xpose.msra.mxu0 0.0
    %479 = vmatprep.subr.mxu0 0.0
    %480 = vmatpush1.xpose.msra.mxu0 0.0
    %481 = vmatprep.subr.mxu0 0.0
    %482 = vmatpush1.xpose.msra.mxu0 0.0
    %483 = vmatprep.subr.mxu0 0.0
    %484 = vmatpush1.xpose.msra.mxu0 0.0
    %485 = vmatprep.subr.mxu0 0.0
    %486 = vmatpush1.xpose.msra.mxu0 0.0
    %487 = vmatprep.subr.mxu0 0.0
    %488 = vmatpush1.xpose.msra.mxu0 0.0
    %489 = vmatprep.subr.mxu0 0.0
    %490 = vmatpush1.xpose.msra.mxu0 0.0
    %491 = vmatprep.subr.mxu0 0.0
    %492 = vmatpush1.xpose.msra.mxu0 0.0
    %493 = vmatprep.subr.mxu0 0.0
    %494 = vmatpush1.xpose.msra.mxu0 0.0
    %495 = vmatprep.subr.mxu0 0.0
    %496 = vmatpush1.xpose.msra.mxu0 0.0
    %497 = vmatprep.subr.mxu0 0.0
    %498 = vmatpush1.xpose.msra.mxu0 0.0
    %499 = vmatprep.subr.mxu0 0.0
    %500 = vmatpush1.xpose.msra.mxu0 0.0
    %501 = vmatprep.subr.mxu0 0.0
    %502 = vmatpush1.xpose.msra.mxu0 0.0
    %503 = vmatprep.subr.mxu0 0.0
    %504 = vmatpush1.xpose.msra.mxu0 0.0
    %505 = vmatprep.subr.mxu0 0.0
    %506 = vmatpush1.xpose.msra.mxu0 0.0
    %507 = vmatprep.mubr.f32.mxu0 0.0
    %508 = vmatmul.mubr.f32.gmra.mrb[0].mxu0 %v439
    %v509 = vpop.f32.mrb[0].mxu0
    %v510 = vadd.f32 0.0, %v509
    %v511 = vpop.f32.mrb[0].mxu0
    %512 = vdwg.mxu0
    %514 = vrot.lane.b32.xlu0 %v198, 96
    %v515 = vpop.permute.xlu0 %514
    %v516 = vsel %vm204, %v198, 0
    %v518 = vsel %vm204, %v515, 0
    %520 = vmatprep.subr.mxu0 0.0
    %521 = vmatpush1.xpose.msra.mxu0 %v518
    %522 = vmatprep.subr.mxu0 0.0
    %523 = vmatpush1.xpose.msra.mxu0 0.0
    %524 = vmatprep.subr.mxu0 0.0
    %525 = vmatpush1.xpose.msra.mxu0 0.0
    %526 = vmatprep.subr.mxu0 0.0
    %527 = vmatpush1.xpose.msra.mxu0 0.0
    %528 = vmatprep.subr.mxu0 0.0
    %529 = vmatpush1.xpose.msra.mxu0 0.0
    %530 = vmatprep.subr.mxu0 0.0
    %531 = vmatpush1.xpose.msra.mxu0 0.0
    %532 = vmatprep.subr.mxu0 0.0
    %533 = vmatpush1.xpose.msra.mxu0 0.0
    %534 = vmatprep.subr.mxu0 0.0
    %535 = vmatpush1.xpose.msra.mxu0 0.0
    %536 = vmatprep.subr.mxu0 0.0
    %537 = vmatpush1.xpose.msra.mxu0 0.0
    %538 = vmatprep.subr.mxu0 0.0
    %539 = vmatpush1.xpose.msra.mxu0 0.0
    %540 = vmatprep.subr.mxu0 0.0
    %541 = vmatpush1.xpose.msra.mxu0 0.0
    %542 = vmatprep.subr.mxu0 0.0
    %543 = vmatpush1.xpose.msra.mxu0 0.0
    %544 = vmatprep.subr.mxu0 0.0
    %545 = vmatpush1.xpose.msra.mxu0 0.0
    %546 = vmatprep.subr.mxu0 0.0
    %547 = vmatpush1.xpose.msra.mxu0 0.0
    %548 = vmatprep.subr.mxu0 0.0
    %549 = vmatpush1.xpose.msra.mxu0 0.0
    %550 = vmatprep.subr.mxu0 0.0
    %551 = vmatpush1.xpose.msra.mxu0 0.0
    %552 = vmatprep.subr.mxu0 0.0
    %553 = vmatpush1.xpose.msra.mxu0 0.0
    %554 = vmatprep.subr.mxu0 0.0
    %555 = vmatpush1.xpose.msra.mxu0 0.0
    %556 = vmatprep.subr.mxu0 0.0
    %557 = vmatpush1.xpose.msra.mxu0 0.0
    %558 = vmatprep.subr.mxu0 0.0
    %559 = vmatpush1.xpose.msra.mxu0 0.0
    %560 = vmatprep.subr.mxu0 0.0
    %561 = vmatpush1.xpose.msra.mxu0 0.0
    %562 = vmatprep.subr.mxu0 0.0
    %563 = vmatpush1.xpose.msra.mxu0 0.0
    %564 = vmatprep.subr.mxu0 0.0
    %565 = vmatpush1.xpose.msra.mxu0 0.0
    %566 = vmatprep.subr.mxu0 0.0
    %567 = vmatpush1.xpose.msra.mxu0 0.0
    %568 = vmatprep.subr.mxu0 0.0
    %569 = vmatpush1.xpose.msra.mxu0 0.0
    %570 = vmatprep.subr.mxu0 0.0
    %571 = vmatpush1.xpose.msra.mxu0 0.0
    %572 = vmatprep.subr.mxu0 0.0
    %573 = vmatpush1.xpose.msra.mxu0 0.0
    %574 = vmatprep.subr.mxu0 0.0
    %575 = vmatpush1.xpose.msra.mxu0 0.0
    %576 = vmatprep.subr.mxu0 0.0
    %577 = vmatpush1.xpose.msra.mxu0 0.0
    %578 = vmatprep.subr.mxu0 0.0
    %579 = vmatpush1.xpose.msra.mxu0 0.0
    %580 = vmatprep.subr.mxu0 0.0
    %581 = vmatpush1.xpose.msra.mxu0 0.0
    %582 = vmatprep.subr.mxu0 0.0
    %583 = vmatpush1.xpose.msra.mxu0 0.0
    %584 = vmatprep.mubr.f32.mxu0 0.0
    %585 = vmatmul.mubr.f32.gmra.mrb[0].mxu0 %v516
    %v586 = vpop.f32.mrb[0].mxu0
    %v587 = vadd.f32 0.0, %v586
    %v588 = vpop.f32.mrb[0].mxu0
    %589 = vdwg.mxu0
    %590 = vrot.lane.b32.xlu0 %v198, 120
    %v591 = vpop.permute.xlu0 %590
    %592 = vrot.lane.b32.xlu0 %v198, 88
    %v593 = vpop.permute.xlu0 %592
    %v594 = vsel %vm204, %v591, 0
    %v596 = vsel %vm204, %v593, 0
    %598 = vmatprep.subr.mxu0 0.0
    %599 = vmatpush1.xpose.msra.mxu0 %v596
    %600 = vmatprep.subr.mxu0 0.0
    %601 = vmatpush1.xpose.msra.mxu0 0.0
    %602 = vmatprep.subr.mxu0 0.0
    %603 = vmatpush1.xpose.msra.mxu0 0.0
    %604 = vmatprep.subr.mxu0 0.0
    %605 = vmatpush1.xpose.msra.mxu0 0.0
    %606 = vmatprep.subr.mxu0 0.0
    %607 = vmatpush1.xpose.msra.mxu0 0.0
    %608 = vmatprep.subr.mxu0 0.0
    %609 = vmatpush1.xpose.msra.mxu0 0.0
    %610 = vmatprep.subr.mxu0 0.0
    %611 = vmatpush1.xpose.msra.mxu0 0.0
    %612 = vmatprep.subr.mxu0 0.0
    %613 = vmatpush1.xpose.msra.mxu0 0.0
    %614 = vmatprep.subr.mxu0 0.0
    %615 = vmatpush1.xpose.msra.mxu0 0.0
    %616 = vmatprep.subr.mxu0 0.0
    %617 = vmatpush1.xpose.msra.mxu0 0.0
    %618 = vmatprep.subr.mxu0 0.0
    %619 = vmatpush1.xpose.msra.mxu0 0.0
    %620 = vmatprep.subr.mxu0 0.0
    %621 = vmatpush1.xpose.msra.mxu0 0.0
    %622 = vmatprep.subr.mxu0 0.0
    %623 = vmatpush1.xpose.msra.mxu0 0.0
    %624 = vmatprep.subr.mxu0 0.0
    %625 = vmatpush1.xpose.msra.mxu0 0.0
    %626 = vmatprep.subr.mxu0 0.0
    %627 = vmatpush1.xpose.msra.mxu0 0.0
    %628 = vmatprep.subr.mxu0 0.0
    %629 = vmatpush1.xpose.msra.mxu0 0.0
    %630 = vmatprep.subr.mxu0 0.0
    %631 = vmatpush1.xpose.msra.mxu0 0.0
    %632 = vmatprep.subr.mxu0 0.0
    %633 = vmatpush1.xpose.msra.mxu0 0.0
    %634 = vmatprep.subr.mxu0 0.0
    %635 = vmatpush1.xpose.msra.mxu0 0.0
    %636 = vmatprep.subr.mxu0 0.0
    %637 = vmatpush1.xpose.msra.mxu0 0.0
    %638 = vmatprep.subr.mxu0 0.0
    %639 = vmatpush1.xpose.msra.mxu0 0.0
    %640 = vmatprep.subr.mxu0 0.0
    %641 = vmatpush1.xpose.msra.mxu0 0.0
    %642 = vmatprep.subr.mxu0 0.0
    %643 = vmatpush1.xpose.msra.mxu0 0.0
    %644 = vmatprep.subr.mxu0 0.0
    %645 = vmatpush1.xpose.msra.mxu0 0.0
    %646 = vmatprep.subr.mxu0 0.0
    %647 = vmatpush1.xpose.msra.mxu0 0.0
    %648 = vmatprep.subr.mxu0 0.0
    %649 = vmatpush1.xpose.msra.mxu0 0.0
    %650 = vmatprep.subr.mxu0 0.0
    %651 = vmatpush1.xpose.msra.mxu0 0.0
    %652 = vmatprep.subr.mxu0 0.0
    %653 = vmatpush1.xpose.msra.mxu0 0.0
    %654 = vmatprep.subr.mxu0 0.0
    %655 = vmatpush1.xpose.msra.mxu0 0.0
    %656 = vmatprep.subr.mxu0 0.0
    %657 = vmatpush1.xpose.msra.mxu0 0.0
    %658 = vmatprep.subr.mxu0 0.0
    %659 = vmatpush1.xpose.msra.mxu0 0.0
    %660 = vmatprep.subr.mxu0 0.0
    %661 = vmatpush1.xpose.msra.mxu0 0.0
    %662 = vmatprep.mubr.f32.mxu0 0.0
    %663 = vmatmul.mubr.f32.gmra.mrb[0].mxu0 %v594
    %v664 = vpop.f32.mrb[0].mxu0
    %v665 = vadd.f32 0.0, %v664
    %v666 = vpop.f32.mrb[0].mxu0
    %667 = vdwg.mxu0
    %668 = vrot.lane.b32.xlu0 %v198, 112
    %v669 = vpop.permute.xlu0 %668
    %670 = vrot.lane.b32.xlu0 %v198, 80
    %v671 = vpop.permute.xlu0 %670
    %v672 = vsel %vm204, %v669, 0
    %v674 = vsel %vm204, %v671, 0
    %676 = vmatprep.subr.mxu0 0.0
    %677 = vmatpush1.xpose.msra.mxu0 %v674
    %678 = vmatprep.subr.mxu0 0.0
    %679 = vmatpush1.xpose.msra.mxu0 0.0
    %680 = vmatprep.subr.mxu0 0.0
    %681 = vmatpush1.xpose.msra.mxu0 0.0
    %682 = vmatprep.subr.mxu0 0.0
    %683 = vmatpush1.xpose.msra.mxu0 0.0
    %684 = vmatprep.subr.mxu0 0.0
    %685 = vmatpush1.xpose.msra.mxu0 0.0
    %686 = vmatprep.subr.mxu0 0.0
    %687 = vmatpush1.xpose.msra.mxu0 0.0
    %688 = vmatprep.subr.mxu0 0.0
    %689 = vmatpush1.xpose.msra.mxu0 0.0
    %690 = vmatprep.subr.mxu0 0.0
    %691 = vmatpush1.xpose.msra.mxu0 0.0
    %692 = vmatprep.subr.mxu0 0.0
    %693 = vmatpush1.xpose.msra.mxu0 0.0
    %694 = vmatprep.subr.mxu0 0.0
    %695 = vmatpush1.xpose.msra.mxu0 0.0
    %696 = vmatprep.subr.mxu0 0.0
    %697 = vmatpush1.xpose.msra.mxu0 0.0
    %698 = vmatprep.subr.mxu0 0.0
    %699 = vmatpush1.xpose.msra.mxu0 0.0
    %700 = vmatprep.subr.mxu0 0.0
    %701 = vmatpush1.xpose.msra.mxu0 0.0
    %702 = vmatprep.subr.mxu0 0.0
    %703 = vmatpush1.xpose.msra.mxu0 0.0
    %704 = vmatprep.subr.mxu0 0.0
    %705 = vmatpush1.xpose.msra.mxu0 0.0
    %706 = vmatprep.subr.mxu0 0.0
    %707 = vmatpush1.xpose.msra.mxu0 0.0
    %708 = vmatprep.subr.mxu0 0.0
    %709 = vmatpush1.xpose.msra.mxu0 0.0
    %710 = vmatprep.subr.mxu0 0.0
    %711 = vmatpush1.xpose.msra.mxu0 0.0
    %712 = vmatprep.subr.mxu0 0.0
    %713 = vmatpush1.xpose.msra.mxu0 0.0
    %714 = vmatprep.subr.mxu0 0.0
    %715 = vmatpush1.xpose.msra.mxu0 0.0
    %716 = vmatprep.subr.mxu0 0.0
    %717 = vmatpush1.xpose.msra.mxu0 0.0
    %718 = vmatprep.subr.mxu0 0.0
    %719 = vmatpush1.xpose.msra.mxu0 0.0
    %720 = vmatprep.subr.mxu0 0.0
    %721 = vmatpush1.xpose.msra.mxu0 0.0
    %722 = vmatprep.subr.mxu0 0.0
    %723 = vmatpush1.xpose.msra.mxu0 0.0
    %724 = vmatprep.subr.mxu0 0.0
    %725 = vmatpush1.xpose.msra.mxu0 0.0
    %726 = vmatprep.subr.mxu0 0.0
    %727 = vmatpush1.xpose.msra.mxu0 0.0
    %728 = vmatprep.subr.mxu0 0.0
    %729 = vmatpush1.xpose.msra.mxu0 0.0
    %730 = vmatprep.subr.mxu0 0.0
    %731 = vmatpush1.xpose.msra.mxu0 0.0
    %732 = vmatprep.subr.mxu0 0.0
    %733 = vmatpush1.xpose.msra.mxu0 0.0
    %734 = vmatprep.subr.mxu0 0.0
    %735 = vmatpush1.xpose.msra.mxu0 0.0
    %736 = vmatprep.subr.mxu0 0.0
    %737 = vmatpush1.xpose.msra.mxu0 0.0
    %738 = vmatprep.subr.mxu0 0.0
    %739 = vmatpush1.xpose.msra.mxu0 0.0
    %740 = vmatprep.mubr.f32.mxu0 0.0
    %741 = vmatmul.mubr.f32.gmra.mrb[0].mxu0 %v672
    %v742 = vpop.f32.mrb[0].mxu0
    %v743 = vadd.f32 0.0, %v742
    %v744 = vpop.f32.mrb[0].mxu0
    %745 = vdwg.mxu0
    %746 = vrot.lane.b32.xlu0 %v198, 104
    %v747 = vpop.permute.xlu0 %746
    %748 = vrot.lane.b32.xlu0 %v198, 72
    %v749 = vpop.permute.xlu0 %748
    %v750 = vsel %vm204, %v747, 0
    %v752 = vsel %vm204, %v749, 0
    %754 = vmatprep.subr.mxu0 0.0
    %755 = vmatpush1.xpose.msra.mxu0 %v752
    %756 = vmatprep.subr.mxu0 0.0
    %757 = vmatpush1.xpose.msra.mxu0 0.0
    %758 = vmatprep.subr.mxu0 0.0
    %759 = vmatpush1.xpose.msra.mxu0 0.0
    %760 = vmatprep.subr.mxu0 0.0
    %761 = vmatpush1.xpose.msra.mxu0 0.0
    %762 = vmatprep.subr.mxu0 0.0
    %763 = vmatpush1.xpose.msra.mxu0 0.0
    %764 = vmatprep.subr.mxu0 0.0
    %765 = vmatpush1.xpose.msra.mxu0 0.0
    %766 = vmatprep.subr.mxu0 0.0
    %767 = vmatpush1.xpose.msra.mxu0 0.0
    %768 = vmatprep.subr.mxu0 0.0
    %769 = vmatpush1.xpose.msra.mxu0 0.0
    %770 = vmatprep.subr.mxu0 0.0
    %771 = vmatpush1.xpose.msra.mxu0 0.0
    %772 = vmatprep.subr.mxu0 0.0
    %773 = vmatpush1.xpose.msra.mxu0 0.0
    %774 = vmatprep.subr.mxu0 0.0
    %775 = vmatpush1.xpose.msra.mxu0 0.0
    %776 = vmatprep.subr.mxu0 0.0
    %777 = vmatpush1.xpose.msra.mxu0 0.0
    %778 = vmatprep.subr.mxu0 0.0
    %779 = vmatpush1.xpose.msra.mxu0 0.0
    %780 = vmatprep.subr.mxu0 0.0
    %781 = vmatpush1.xpose.msra.mxu0 0.0
    %782 = vmatprep.subr.mxu0 0.0
    %783 = vmatpush1.xpose.msra.mxu0 0.0
    %784 = vmatprep.subr.mxu0 0.0
    %785 = vmatpush1.xpose.msra.mxu0 0.0
    %786 = vmatprep.subr.mxu0 0.0
    %787 = vmatpush1.xpose.msra.mxu0 0.0
    %788 = vmatprep.subr.mxu0 0.0
    %789 = vmatpush1.xpose.msra.mxu0 0.0
    %790 = vmatprep.subr.mxu0 0.0
    %791 = vmatpush1.xpose.msra.mxu0 0.0
    %792 = vmatprep.subr.mxu0 0.0
    %793 = vmatpush1.xpose.msra.mxu0 0.0
    %794 = vmatprep.subr.mxu0 0.0
    %795 = vmatpush1.xpose.msra.mxu0 0.0
    %796 = vmatprep.subr.mxu0 0.0
    %797 = vmatpush1.xpose.msra.mxu0 0.0
    %798 = vmatprep.subr.mxu0 0.0
    %799 = vmatpush1.xpose.msra.mxu0 0.0
    %800 = vmatprep.subr.mxu0 0.0
    %801 = vmatpush1.xpose.msra.mxu0 0.0
    %802 = vmatprep.subr.mxu0 0.0
    %803 = vmatpush1.xpose.msra.mxu0 0.0
    %804 = vmatprep.subr.mxu0 0.0
    %805 = vmatpush1.xpose.msra.mxu0 0.0
    %806 = vmatprep.subr.mxu0 0.0
    %807 = vmatpush1.xpose.msra.mxu0 0.0
    %808 = vmatprep.subr.mxu0 0.0
    %809 = vmatpush1.xpose.msra.mxu0 0.0
    %810 = vmatprep.subr.mxu0 0.0
    %811 = vmatpush1.xpose.msra.mxu0 0.0
    %812 = vmatprep.subr.mxu0 0.0
    %813 = vmatpush1.xpose.msra.mxu0 0.0
    %814 = vmatprep.subr.mxu0 0.0
    %815 = vmatpush1.xpose.msra.mxu0 0.0
    %816 = vmatprep.subr.mxu0 0.0
    %817 = vmatpush1.xpose.msra.mxu0 0.0
    %818 = vmatprep.mubr.f32.mxu0 0.0
    %819 = vmatmul.mubr.f32.gmra.mrb[0].mxu0 %v750
    %v820 = vpop.f32.mrb[0].mxu0
    %v821 = vadd.f32 0.0, %v820
    %v822 = vpop.f32.mrb[0].mxu0
    %823 = vdwg.mxu0
    %v824 = vld [vmem:[%s1] sm:$0xff]
    %v825 = vld [vmem:[%s1 + $0x8] sm:$0xff]
    %v826 = vld [vmem:[%s1 + $0x10] sm:$0xff]
    %v827 = vld [vmem:[%s1 + $0x18] sm:$0xff]
    %v828 = vld [vmem:[%s1 + $0x20] sm:$0xff]
    %v829 = vld [vmem:[%s1 + $0x28] sm:$0xff]
    %v830 = vld [vmem:[%s1 + $0x30] sm:$0xff]
    %v831 = vld [vmem:[%s1 + $0x38] sm:$0xff]
    %v832 = vadd.f32 %v276, %v824
    %v833 = vadd.f32 %v354, %v825
    %v834 = vadd.f32 %v432, %v826
    %v835 = vadd.f32 %v510, %v827
    %v836 = vadd.f32 %v587, %v828
    %v837 = vadd.f32 %v665, %v829
    %v838 = vadd.f32 %v743, %v830
    %v839 = vadd.f32 %v821, %v831
    %v840 = vsel %vm204, %v832, -inf
    %841 = vmax.xlane.f32.xlu0 %v840
    %v842 = vpop.xlane.xlu0 %841
    %v843 = vsel %vm204, %v833, -inf
    %844 = vmax.xlane.f32.xlu0 %v843
    %v845 = vpop.xlane.xlu0 %844
    %v846 = vsel %vm204, %v834, -inf
    %847 = vmax.xlane.f32.xlu0 %v846
    %v848 = vpop.xlane.xlu0 %847
    %v849 = vsel %vm204, %v835, -inf
    %850 = vmax.xlane.f32.xlu0 %v849
    %v851 = vpop.xlane.xlu0 %850
    %v852 = vsel %vm204, %v836, -inf
    %853 = vmax.xlane.f32.xlu0 %v852
    %v854 = vpop.xlane.xlu0 %853
    %v855 = vsel %vm204, %v837, -inf
    %856 = vmax.xlane.f32.xlu0 %v855
    %v857 = vpop.xlane.xlu0 %856
    %v858 = vsel %vm204, %v838, -inf
    %859 = vmax.xlane.f32.xlu0 %v858
    %v860 = vpop.xlane.xlu0 %859
    %v861 = vsel %vm204, %v839, -inf
    %862 = vmax.xlane.f32.xlu0 %v861
    %v863 = vpop.xlane.xlu0 %862
    %v864 = vsub.f32 %v832, %v842
    %v865 = vsub.f32 %v833, %v845
    %v866 = vsub.f32 %v834, %v848
    %v867 = vsub.f32 %v835, %v851
    %v868 = vsub.f32 %v836, %v854
    %v869 = vsub.f32 %v837, %v857
    %v870 = vsub.f32 %v838, %v860
    %v871 = vsub.f32 %v839, %v863
    %v872 = vmul.f32 %v864, 1.442695
    %v873 = vpow.pop %v872
    %v874 = vmul.f32 %v865, 1.442695
    %v875 = vpow.pop %v874
    %v876 = vmul.f32 %v866, 1.442695
    %v877 = vpow.pop %v876
    %v878 = vmul.f32 %v867, 1.442695
    %v879 = vpow.pop %v878
    %v880 = vmul.f32 %v868, 1.442695
    %v881 = vpow.pop %v880
    %v882 = vmul.f32 %v869, 1.442695
    %v883 = vpow.pop %v882
    %v884 = vmul.f32 %v870, 1.442695
    %v885 = vpow.pop %v884
    %v886 = vmul.f32 %v871, 1.442695
    %v887 = vpow.pop %v886
    %v888 = vsel %vm204, %v873, 0.0
    %889 = vadd.xlane.f32.xlu0 %v888
    %v890 = vpop.xlane.xlu0 %889
    %v891 = vsel %vm204, %v875, 0.0
    %892 = vadd.xlane.f32.xlu0 %v891
    %v893 = vpop.xlane.xlu0 %892
    %v894 = vsel %vm204, %v877, 0.0
    %895 = vadd.xlane.f32.xlu0 %v894
    %v896 = vpop.xlane.xlu0 %895
    %v897 = vsel %vm204, %v879, 0.0
    %898 = vadd.xlane.f32.xlu0 %v897
    %v899 = vpop.xlane.xlu0 %898
    %v900 = vsel %vm204, %v881, 0.0
    %901 = vadd.xlane.f32.xlu0 %v900
    %v902 = vpop.xlane.xlu0 %901
    %v903 = vsel %vm204, %v883, 0.0
    %904 = vadd.xlane.f32.xlu0 %v903
    %v905 = vpop.xlane.xlu0 %904
    %v906 = vsel %vm204, %v885, 0.0
    %907 = vadd.xlane.f32.xlu0 %v906
    %v908 = vpop.xlane.xlu0 %907
    %v909 = vsel %vm204, %v887, 0.0
    %910 = vadd.xlane.f32.xlu0 %v909
    %v911 = vpop.xlane.xlu0 %910
    %v912 = vrcp.pop %v890
    %v913 = vrcp.pop %v893
    %v914 = vrcp.pop %v896
    %v915 = vrcp.pop %v899
    %v916 = vrcp.pop %v902
    %v917 = vrcp.pop %v905
    %v918 = vrcp.pop %v908
    %v919 = vrcp.pop %v911
    %v920 = vmul.f32 %v873, %v912
    %v921 = vmul.f32 %v875, %v913
    %v922 = vmul.f32 %v877, %v914
    %v923 = vmul.f32 %v879, %v915
    %v924 = vmul.f32 %v881, %v916
    %v925 = vmul.f32 %v883, %v917
    %v926 = vmul.f32 %v885, %v918
    %v927 = vmul.f32 %v887, %v919
    %928 = vrot.lane.b32.xlu0 %v193, 64
    %v929 = vpop.permute.xlu0 %928
    %v932 = vsel %vm204, %v920, 0
    %934 = vmatprep.subr.mxu0 0.0
    %935 = vmatpush1.msra.mxu0 %v929
    %936 = vmatprep.subr.mxu0 0.0
    %937 = vmatpush1.msra.mxu0 0.0
    %938 = vmatprep.subr.mxu0 0.0
    %939 = vmatpush1.msra.mxu0 0.0
    %940 = vmatprep.subr.mxu0 0.0
    %941 = vmatpush1.msra.mxu0 0.0
    %942 = vmatprep.subr.mxu0 0.0
    %943 = vmatpush1.msra.mxu0 0.0
    %944 = vmatprep.subr.mxu0 0.0
    %945 = vmatpush1.msra.mxu0 0.0
    %946 = vmatprep.subr.mxu0 0.0
    %947 = vmatpush1.msra.mxu0 0.0
    %948 = vmatprep.subr.mxu0 0.0
    %949 = vmatpush1.msra.mxu0 0.0
    %950 = vmatprep.subr.mxu0 0.0
    %951 = vmatpush1.msra.mxu0 0.0
    %952 = vmatprep.subr.mxu0 0.0
    %953 = vmatpush1.msra.mxu0 0.0
    %954 = vmatprep.subr.mxu0 0.0
    %955 = vmatpush1.msra.mxu0 0.0
    %956 = vmatprep.subr.mxu0 0.0
    %957 = vmatpush1.msra.mxu0 0.0
    %958 = vmatprep.subr.mxu0 0.0
    %959 = vmatpush1.msra.mxu0 0.0
    %960 = vmatprep.subr.mxu0 0.0
    %961 = vmatpush1.msra.mxu0 0.0
    %962 = vmatprep.subr.mxu0 0.0
    %963 = vmatpush1.msra.mxu0 0.0
    %964 = vmatprep.subr.mxu0 0.0
    %965 = vmatpush1.msra.mxu0 0.0
    %966 = vmatprep.subr.mxu0 0.0
    %967 = vmatpush1.msra.mxu0 0.0
    %968 = vmatprep.subr.mxu0 0.0
    %969 = vmatpush1.msra.mxu0 0.0
    %970 = vmatprep.subr.mxu0 0.0
    %971 = vmatpush1.msra.mxu0 0.0
    %972 = vmatprep.subr.mxu0 0.0
    %973 = vmatpush1.msra.mxu0 0.0
    %974 = vmatprep.subr.mxu0 0.0
    %975 = vmatpush1.msra.mxu0 0.0
    %976 = vmatprep.subr.mxu0 0.0
    %977 = vmatpush1.msra.mxu0 0.0
    %978 = vmatprep.subr.mxu0 0.0
    %979 = vmatpush1.msra.mxu0 0.0
    %980 = vmatprep.subr.mxu0 0.0
    %981 = vmatpush1.msra.mxu0 0.0
    %982 = vmatprep.subr.mxu0 0.0
    %983 = vmatpush1.msra.mxu0 0.0
    %984 = vmatprep.subr.mxu0 0.0
    %985 = vmatpush1.msra.mxu0 0.0
    %986 = vmatprep.subr.mxu0 0.0
    %987 = vmatpush1.msra.mxu0 0.0
    %988 = vmatprep.subr.mxu0 0.0
    %989 = vmatpush1.msra.mxu0 0.0
    %990 = vmatprep.subr.mxu0 0.0
    %991 = vmatpush1.msra.mxu0 0.0
    %992 = vmatprep.subr.mxu0 0.0
    %993 = vmatpush1.msra.mxu0 0.0
    %994 = vmatprep.subr.mxu0 0.0
    %995 = vmatpush1.msra.mxu0 0.0
    %996 = vmatprep.subr.mxu0 0.0
    %997 = vmatpush1.msra.mxu0 0.0
    %998 = vmatprep.mubr.f32.mxu0 0.0
    %999 = vmatmul.mubr.f32.gmra.mrb[0].mxu0 %v932
    %v1000 = vpop.f32.mrb[0].mxu0
    %v1001 = vadd.f32 0.0, %v1000
    %v1002 = vpop.f32.mrb[0].mxu0
    %1003 = vdwg.mxu0
    %1004 = vrot.lane.b32.xlu0 %v193, 56
    %v1005 = vpop.permute.xlu0 %1004
    %v1008 = vsel %vm204, %v921, 0
    %1010 = vmatprep.subr.mxu0 0.0
    %1011 = vmatpush1.msra.mxu0 %v1005
    %1012 = vmatprep.subr.mxu0 0.0
    %1013 = vmatpush1.msra.mxu0 0.0
    %1014 = vmatprep.subr.mxu0 0.0
    %1015 = vmatpush1.msra.mxu0 0.0
    %1016 = vmatprep.subr.mxu0 0.0
    %1017 = vmatpush1.msra.mxu0 0.0
    %1018 = vmatprep.subr.mxu0 0.0
    %1019 = vmatpush1.msra.mxu0 0.0
    %1020 = vmatprep.subr.mxu0 0.0
    %1021 = vmatpush1.msra.mxu0 0.0
    %1022 = vmatprep.subr.mxu0 0.0
    %1023 = vmatpush1.msra.mxu0 0.0
    %1024 = vmatprep.subr.mxu0 0.0
    %1025 = vmatpush1.msra.mxu0 0.0
    %1026 = vmatprep.subr.mxu0 0.0
    %1027 = vmatpush1.msra.mxu0 0.0
    %1028 = vmatprep.subr.mxu0 0.0
    %1029 = vmatpush1.msra.mxu0 0.0
    %1030 = vmatprep.subr.mxu0 0.0
    %1031 = vmatpush1.msra.mxu0 0.0
    %1032 = vmatprep.subr.mxu0 0.0
    %1033 = vmatpush1.msra.mxu0 0.0
    %1034 = vmatprep.subr.mxu0 0.0
    %1035 = vmatpush1.msra.mxu0 0.0
    %1036 = vmatprep.subr.mxu0 0.0
    %1037 = vmatpush1.msra.mxu0 0.0
    %1038 = vmatprep.subr.mxu0 0.0
    %1039 = vmatpush1.msra.mxu0 0.0
    %1040 = vmatprep.subr.mxu0 0.0
    %1041 = vmatpush1.msra.mxu0 0.0
    %1042 = vmatprep.subr.mxu0 0.0
    %1043 = vmatpush1.msra.mxu0 0.0
    %1044 = vmatprep.subr.mxu0 0.0
    %1045 = vmatpush1.msra.mxu0 0.0
    %1046 = vmatprep.subr.mxu0 0.0
    %1047 = vmatpush1.msra.mxu0 0.0
    %1048 = vmatprep.subr.mxu0 0.0
    %1049 = vmatpush1.msra.mxu0 0.0
    %1050 = vmatprep.subr.mxu0 0.0
    %1051 = vmatpush1.msra.mxu0 0.0
    %1052 = vmatprep.subr.mxu0 0.0
    %1053 = vmatpush1.msra.mxu0 0.0
    %1054 = vmatprep.subr.mxu0 0.0
    %1055 = vmatpush1.msra.mxu0 0.0
    %1056 = vmatprep.subr.mxu0 0.0
    %1057 = vmatpush1.msra.mxu0 0.0
    %1058 = vmatprep.subr.mxu0 0.0
    %1059 = vmatpush1.msra.mxu0 0.0
    %1060 = vmatprep.subr.mxu0 0.0
    %1061 = vmatpush1.msra.mxu0 0.0
    %1062 = vmatprep.subr.mxu0 0.0
    %1063 = vmatpush1.msra.mxu0 0.0
    %1064 = vmatprep.subr.mxu0 0.0
    %1065 = vmatpush1.msra.mxu0 0.0
    %1066 = vmatprep.subr.mxu0 0.0
    %1067 = vmatpush1.msra.mxu0 0.0
    %1068 = vmatprep.subr.mxu0 0.0
    %1069 = vmatpush1.msra.mxu0 0.0
    %1070 = vmatprep.subr.mxu0 0.0
    %1071 = vmatpush1.msra.mxu0 0.0
    %1072 = vmatprep.subr.mxu0 0.0
    %1073 = vmatpush1.msra.mxu0 0.0
    %1074 = vmatprep.mubr.f32.mxu0 0.0
    %1075 = vmatmul.mubr.f32.gmra.mrb[0].mxu0 %v1008
    %v1076 = vpop.f32.mrb[0].mxu0
    %v1077 = vadd.f32 0.0, %v1076
    %v1078 = vpop.f32.mrb[0].mxu0
    %1079 = vdwg.mxu0
    %v1081 = vsel %vm204, %v1077, 0
    %1083 = vmatprep.subr.mxu0 0.0
    %1084 = vmatpush1.msra.mxu0 %v47
    %1085 = vmatprep.subr.mxu0 0.0
    %1086 = vmatpush1.msra.mxu0 0.0
    %1087 = vmatprep.subr.mxu0 0.0
    %1088 = vmatpush1.msra.mxu0 0.0
    %1089 = vmatprep.subr.mxu0 0.0
    %1090 = vmatpush1.msra.mxu0 0.0
    %1091 = vmatprep.subr.mxu0 0.0
    %1092 = vmatpush1.msra.mxu0 0.0
    %1093 = vmatprep.subr.mxu0 0.0
    %1094 = vmatpush1.msra.mxu0 0.0
    %1095 = vmatprep.subr.mxu0 0.0
    %1096 = vmatpush1.msra.mxu0 0.0
    %1097 = vmatprep.subr.mxu0 0.0
    %1098 = vmatpush1.msra.mxu0 0.0
    %1099 = vmatprep.subr.mxu0 0.0
    %1100 = vmatpush1.msra.mxu0 0.0
    %1101 = vmatprep.subr.mxu0 0.0
    %1102 = vmatpush1.msra.mxu0 0.0
    %1103 = vmatprep.subr.mxu0 0.0
    %1104 = vmatpush1.msra.mxu0 0.0
    %1105 = vmatprep.subr.mxu0 0.0
    %1106 = vmatpush1.msra.mxu0 0.0
    %1107 = vmatprep.subr.mxu0 0.0
    %1108 = vmatpush1.msra.mxu0 0.0
    %1109 = vmatprep.subr.mxu0 0.0
    %1110 = vmatpush1.msra.mxu0 0.0
    %1111 = vmatprep.subr.mxu0 0.0
    %1112 = vmatpush1.msra.mxu0 0.0
    %1113 = vmatprep.subr.mxu0 0.0
    %1114 = vmatpush1.msra.mxu0 0.0
    %1115 = vmatprep.subr.mxu0 0.0
    %1116 = vmatpush1.msra.mxu0 0.0
    %1117 = vmatprep.subr.mxu0 0.0
    %1118 = vmatpush1.msra.mxu0 0.0
    %1119 = vmatprep.subr.mxu0 0.0
    %1120 = vmatpush1.msra.mxu0 0.0
    %1121 = vmatprep.subr.mxu0 0.0
    %1122 = vmatpush1.msra.mxu0 0.0
    %1123 = vmatprep.subr.mxu0 0.0
    %1124 = vmatpush1.msra.mxu0 0.0
    %1125 = vmatprep.subr.mxu0 0.0
    %1126 = vmatpush1.msra.mxu0 0.0
    %1127 = vmatprep.subr.mxu0 0.0
    %1128 = vmatpush1.msra.mxu0 0.0
    %1129 = vmatprep.subr.mxu0 0.0
    %1130 = vmatpush1.msra.mxu0 0.0
    %1131 = vmatprep.subr.mxu0 0.0
    %1132 = vmatpush1.msra.mxu0 0.0
    %1133 = vmatprep.subr.mxu0 0.0
    %1134 = vmatpush1.msra.mxu0 0.0
    %1135 = vmatprep.subr.mxu0 0.0
    %1136 = vmatpush1.msra.mxu0 0.0
    %1137 = vmatprep.subr.mxu0 0.0
    %1138 = vmatpush1.msra.mxu0 0.0
    %1139 = vmatprep.subr.mxu0 0.0
    %1140 = vmatpush1.msra.mxu0 0.0
    %1141 = vmatprep.subr.mxu0 0.0
    %1142 = vmatpush1.msra.mxu0 0.0
    %1143 = vmatprep.subr.mxu0 0.0
    %1144 = vmatpush1.msra.mxu0 0.0
    %1145 = vmatprep.subr.mxu0 0.0
    %1146 = vmatpush1.msra.mxu0 0.0
    %1147 = vmatprep.mubr.f32.mxu0 0.0
    %1148 = vmatmul.mubr.f32.gmra.mrb[0].mxu0 %v1081
    %v1149 = vpop.f32.mrb[0].mxu0
    %v1150 = vadd.f32 0.0, %v1149
    %v1151 = vpop.f32.mrb[0].mxu0
    %1152 = vdwg.mxu0
    %v1154 = vsel %vm204, %v1001, 0
    %1156 = vmatprep.subr.mxu0 0.0
    %1157 = vmatpush1.msra.mxu0 %v46
    %1158 = vmatprep.subr.mxu0 0.0
    %1159 = vmatpush1.msra.mxu0 0.0
    %1160 = vmatprep.subr.mxu0 0.0
    %1161 = vmatpush1.msra.mxu0 0.0
    %1162 = vmatprep.subr.mxu0 0.0
    %1163 = vmatpush1.msra.mxu0 0.0
    %1164 = vmatprep.subr.mxu0 0.0
    %1165 = vmatpush1.msra.mxu0 0.0
    %1166 = vmatprep.subr.mxu0 0.0
    %1167 = vmatpush1.msra.mxu0 0.0
    %1168 = vmatprep.subr.mxu0 0.0
    %1169 = vmatpush1.msra.mxu0 0.0
    %1170 = vmatprep.subr.mxu0 0.0
    %1171 = vmatpush1.msra.mxu0 0.0
    %1172 = vmatprep.subr.mxu0 0.0
    %1173 = vmatpush1.msra.mxu0 0.0
    %1174 = vmatprep.subr.mxu0 0.0
    %1175 = vmatpush1.msra.mxu0 0.0
    %1176 = vmatprep.subr.mxu0 0.0
    %1177 = vmatpush1.msra.mxu0 0.0
    %1178 = vmatprep.subr.mxu0 0.0
    %1179 = vmatpush1.msra.mxu0 0.0
    %1180 = vmatprep.subr.mxu0 0.0
    %1181 = vmatpush1.msra.mxu0 0.0
    %1182 = vmatprep.subr.mxu0 0.0
    %1183 = vmatpush1.msra.mxu0 0.0
    %1184 = vmatprep.subr.mxu0 0.0
    %1185 = vmatpush1.msra.mxu0 0.0
    %1186 = vmatprep.subr.mxu0 0.0
    %1187 = vmatpush1.msra.mxu0 0.0
    %1188 = vmatprep.subr.mxu0 0.0
    %1189 = vmatpush1.msra.mxu0 0.0
    %1190 = vmatprep.subr.mxu0 0.0
    %1191 = vmatpush1.msra.mxu0 0.0
    %1192 = vmatprep.subr.mxu0 0.0
    %1193 = vmatpush1.msra.mxu0 0.0
    %1194 = vmatprep.subr.mxu0 0.0
    %1195 = vmatpush1.msra.mxu0 0.0
    %1196 = vmatprep.subr.mxu0 0.0
    %1197 = vmatpush1.msra.mxu0 0.0
    %1198 = vmatprep.subr.mxu0 0.0
    %1199 = vmatpush1.msra.mxu0 0.0
    %1200 = vmatprep.subr.mxu0 0.0
    %1201 = vmatpush1.msra.mxu0 0.0
    %1202 = vmatprep.subr.mxu0 0.0
    %1203 = vmatpush1.msra.mxu0 0.0
    %1204 = vmatprep.subr.mxu0 0.0
    %1205 = vmatpush1.msra.mxu0 0.0
    %1206 = vmatprep.subr.mxu0 0.0
    %1207 = vmatpush1.msra.mxu0 0.0
    %1208 = vmatprep.subr.mxu0 0.0
    %1209 = vmatpush1.msra.mxu0 0.0
    %1210 = vmatprep.subr.mxu0 0.0
    %1211 = vmatpush1.msra.mxu0 0.0
    %1212 = vmatprep.subr.mxu0 0.0
    %1213 = vmatpush1.msra.mxu0 0.0
    %1214 = vmatprep.subr.mxu0 0.0
    %1215 = vmatpush1.msra.mxu0 0.0
    %1216 = vmatprep.subr.mxu0 0.0
    %1217 = vmatpush1.msra.mxu0 0.0
    %1218 = vmatprep.subr.mxu0 0.0
    %1219 = vmatpush1.msra.mxu0 0.0
    %1220 = vmatprep.mubr.f32.mxu0 0.0
    %1221 = vmatmul.mubr.f32.gmra.mrb[0].mxu0 %v1154
    %v1222 = vpop.f32.mrb[0].mxu0
    %v1223 = vadd.f32 %v1150, %v1222
    %v1224 = vpop.f32.mrb[0].mxu0
    %1225 = vdwg.mxu0
    %1226 = vrot.lane.b32.xlu0 %v193, 48
    %v1227 = vpop.permute.xlu0 %1226
    %v1230 = vsel %vm204, %v922, 0
    %1232 = vmatprep.subr.mxu0 0.0
    %1233 = vmatpush1.msra.mxu0 %v1227
    %1234 = vmatprep.subr.mxu0 0.0
    %1235 = vmatpush1.msra.mxu0 0.0
    %1236 = vmatprep.subr.mxu0 0.0
    %1237 = vmatpush1.msra.mxu0 0.0
    %1238 = vmatprep.subr.mxu0 0.0
    %1239 = vmatpush1.msra.mxu0 0.0
    %1240 = vmatprep.subr.mxu0 0.0
    %1241 = vmatpush1.msra.mxu0 0.0
    %1242 = vmatprep.subr.mxu0 0.0
    %1243 = vmatpush1.msra.mxu0 0.0
    %1244 = vmatprep.subr.mxu0 0.0
    %1245 = vmatpush1.msra.mxu0 0.0
    %1246 = vmatprep.subr.mxu0 0.0
    %1247 = vmatpush1.msra.mxu0 0.0
    %1248 = vmatprep.subr.mxu0 0.0
    %1249 = vmatpush1.msra.mxu0 0.0
    %1250 = vmatprep.subr.mxu0 0.0
    %1251 = vmatpush1.msra.mxu0 0.0
    %1252 = vmatprep.subr.mxu0 0.0
    %1253 = vmatpush1.msra.mxu0 0.0
    %1254 = vmatprep.subr.mxu0 0.0
    %1255 = vmatpush1.msra.mxu0 0.0
    %1256 = vmatprep.subr.mxu0 0.0
    %1257 = vmatpush1.msra.mxu0 0.0
    %1258 = vmatprep.subr.mxu0 0.0
    %1259 = vmatpush1.msra.mxu0 0.0
    %1260 = vmatprep.subr.mxu0 0.0
    %1261 = vmatpush1.msra.mxu0 0.0
    %1262 = vmatprep.subr.mxu0 0.0
    %1263 = vmatpush1.msra.mxu0 0.0
    %1264 = vmatprep.subr.mxu0 0.0
    %1265 = vmatpush1.msra.mxu0 0.0
    %1266 = vmatprep.subr.mxu0 0.0
    %1267 = vmatpush1.msra.mxu0 0.0
    %1268 = vmatprep.subr.mxu0 0.0
    %1269 = vmatpush1.msra.mxu0 0.0
    %1270 = vmatprep.subr.mxu0 0.0
    %1271 = vmatpush1.msra.mxu0 0.0
    %1272 = vmatprep.subr.mxu0 0.0
    %1273 = vmatpush1.msra.mxu0 0.0
    %1274 = vmatprep.subr.mxu0 0.0
    %1275 = vmatpush1.msra.mxu0 0.0
    %1276 = vmatprep.subr.mxu0 0.0
    %1277 = vmatpush1.msra.mxu0 0.0
    %1278 = vmatprep.subr.mxu0 0.0
    %1279 = vmatpush1.msra.mxu0 0.0
    %1280 = vmatprep.subr.mxu0 0.0
    %1281 = vmatpush1.msra.mxu0 0.0
    %1282 = vmatprep.subr.mxu0 0.0
    %1283 = vmatpush1.msra.mxu0 0.0
    %1284 = vmatprep.subr.mxu0 0.0
    %1285 = vmatpush1.msra.mxu0 0.0
    %1286 = vmatprep.subr.mxu0 0.0
    %1287 = vmatpush1.msra.mxu0 0.0
    %1288 = vmatprep.subr.mxu0 0.0
    %1289 = vmatpush1.msra.mxu0 0.0
    %1290 = vmatprep.subr.mxu0 0.0
    %1291 = vmatpush1.msra.mxu0 0.0
    %1292 = vmatprep.subr.mxu0 0.0
    %1293 = vmatpush1.msra.mxu0 0.0
    %1294 = vmatprep.subr.mxu0 0.0
    %1295 = vmatpush1.msra.mxu0 0.0
    %1296 = vmatprep.mubr.f32.mxu0 0.0
    %1297 = vmatmul.mubr.f32.gmra.mrb[0].mxu0 %v1230
    %v1298 = vpop.f32.mrb[0].mxu0
    %v1299 = vadd.f32 0.0, %v1298
    %v1300 = vpop.f32.mrb[0].mxu0
    %1301 = vdwg.mxu0
    %v1303 = vsel %vm204, %v1299, 0
    %1305 = vmatprep.subr.mxu0 0.0
    %1306 = vmatpush1.msra.mxu0 %v48
    %1307 = vmatprep.subr.mxu0 0.0
    %1308 = vmatpush1.msra.mxu0 0.0
    %1309 = vmatprep.subr.mxu0 0.0
    %1310 = vmatpush1.msra.mxu0 0.0
    %1311 = vmatprep.subr.mxu0 0.0
    %1312 = vmatpush1.msra.mxu0 0.0
    %1313 = vmatprep.subr.mxu0 0.0
    %1314 = vmatpush1.msra.mxu0 0.0
    %1315 = vmatprep.subr.mxu0 0.0
    %1316 = vmatpush1.msra.mxu0 0.0
    %1317 = vmatprep.subr.mxu0 0.0
    %1318 = vmatpush1.msra.mxu0 0.0
    %1319 = vmatprep.subr.mxu0 0.0
    %1320 = vmatpush1.msra.mxu0 0.0
    %1321 = vmatprep.subr.mxu0 0.0
    %1322 = vmatpush1.msra.mxu0 0.0
    %1323 = vmatprep.subr.mxu0 0.0
    %1324 = vmatpush1.msra.mxu0 0.0
    %1325 = vmatprep.subr.mxu0 0.0
    %1326 = vmatpush1.msra.mxu0 0.0
    %1327 = vmatprep.subr.mxu0 0.0
    %1328 = vmatpush1.msra.mxu0 0.0
    %1329 = vmatprep.subr.mxu0 0.0
    %1330 = vmatpush1.msra.mxu0 0.0
    %1331 = vmatprep.subr.mxu0 0.0
    %1332 = vmatpush1.msra.mxu0 0.0
    %1333 = vmatprep.subr.mxu0 0.0
    %1334 = vmatpush1.msra.mxu0 0.0
    %1335 = vmatprep.subr.mxu0 0.0
    %1336 = vmatpush1.msra.mxu0 0.0
    %1337 = vmatprep.subr.mxu0 0.0
    %1338 = vmatpush1.msra.mxu0 0.0
    %1339 = vmatprep.subr.mxu0 0.0
    %1340 = vmatpush1.msra.mxu0 0.0
    %1341 = vmatprep.subr.mxu0 0.0
    %1342 = vmatpush1.msra.mxu0 0.0
    %1343 = vmatprep.subr.mxu0 0.0
    %1344 = vmatpush1.msra.mxu0 0.0
    %1345 = vmatprep.subr.mxu0 0.0
    %1346 = vmatpush1.msra.mxu0 0.0
    %1347 = vmatprep.subr.mxu0 0.0
    %1348 = vmatpush1.msra.mxu0 0.0
    %1349 = vmatprep.subr.mxu0 0.0
    %1350 = vmatpush1.msra.mxu0 0.0
    %1351 = vmatprep.subr.mxu0 0.0
    %1352 = vmatpush1.msra.mxu0 0.0
    %1353 = vmatprep.subr.mxu0 0.0
    %1354 = vmatpush1.msra.mxu0 0.0
    %1355 = vmatprep.subr.mxu0 0.0
    %1356 = vmatpush1.msra.mxu0 0.0
    %1357 = vmatprep.subr.mxu0 0.0
    %1358 = vmatpush1.msra.mxu0 0.0
    %1359 = vmatprep.subr.mxu0 0.0
    %1360 = vmatpush1.msra.mxu0 0.0
    %1361 = vmatprep.subr.mxu0 0.0
    %1362 = vmatpush1.msra.mxu0 0.0
    %1363 = vmatprep.subr.mxu0 0.0
    %1364 = vmatpush1.msra.mxu0 0.0
    %1365 = vmatprep.subr.mxu0 0.0
    %1366 = vmatpush1.msra.mxu0 0.0
    %1367 = vmatprep.subr.mxu0 0.0
    %1368 = vmatpush1.msra.mxu0 0.0
    %1369 = vmatprep.mubr.f32.mxu0 0.0
    %1370 = vmatmul.mubr.f32.gmra.mrb[0].mxu0 %v1303
    %v1371 = vpop.f32.mrb[0].mxu0
    %v1372 = vadd.f32 0.0, %v1371
    %v1373 = vpop.f32.mrb[0].mxu0
    %1374 = vdwg.mxu0
    %v1375 = vadd.f32 %v1223, %v1372
    %1376 = vrot.lane.b32.xlu0 %v193, 40
    %v1377 = vpop.permute.xlu0 %1376
    %v1380 = vsel %vm204, %v923, 0
    %1382 = vmatprep.subr.mxu0 0.0
    %1383 = vmatpush1.msra.mxu0 %v1377
    %1384 = vmatprep.subr.mxu0 0.0
    %1385 = vmatpush1.msra.mxu0 0.0
    %1386 = vmatprep.subr.mxu0 0.0
    %1387 = vmatpush1.msra.mxu0 0.0
    %1388 = vmatprep.subr.mxu0 0.0
    %1389 = vmatpush1.msra.mxu0 0.0
    %1390 = vmatprep.subr.mxu0 0.0
    %1391 = vmatpush1.msra.mxu0 0.0
    %1392 = vmatprep.subr.mxu0 0.0
    %1393 = vmatpush1.msra.mxu0 0.0
    %1394 = vmatprep.subr.mxu0 0.0
    %1395 = vmatpush1.msra.mxu0 0.0
    %1396 = vmatprep.subr.mxu0 0.0
    %1397 = vmatpush1.msra.mxu0 0.0
    %1398 = vmatprep.subr.mxu0 0.0
    %1399 = vmatpush1.msra.mxu0 0.0
    %1400 = vmatprep.subr.mxu0 0.0
    %1401 = vmatpush1.msra.mxu0 0.0
    %1402 = vmatprep.subr.mxu0 0.0
    %1403 = vmatpush1.msra.mxu0 0.0
    %1404 = vmatprep.subr.mxu0 0.0
    %1405 = vmatpush1.msra.mxu0 0.0
    %1406 = vmatprep.subr.mxu0 0.0
    %1407 = vmatpush1.msra.mxu0 0.0
    %1408 = vmatprep.subr.mxu0 0.0
    %1409 = vmatpush1.msra.mxu0 0.0
    %1410 = vmatprep.subr.mxu0 0.0
    %1411 = vmatpush1.msra.mxu0 0.0
    %1412 = vmatprep.subr.mxu0 0.0
    %1413 = vmatpush1.msra.mxu0 0.0
    %1414 = vmatprep.subr.mxu0 0.0
    %1415 = vmatpush1.msra.mxu0 0.0
    %1416 = vmatprep.subr.mxu0 0.0
    %1417 = vmatpush1.msra.mxu0 0.0
    %1418 = vmatprep.subr.mxu0 0.0
    %1419 = vmatpush1.msra.mxu0 0.0
    %1420 = vmatprep.subr.mxu0 0.0
    %1421 = vmatpush1.msra.mxu0 0.0
    %1422 = vmatprep.subr.mxu0 0.0
    %1423 = vmatpush1.msra.mxu0 0.0
    %1424 = vmatprep.subr.mxu0 0.0
    %1425 = vmatpush1.msra.mxu0 0.0
    %1426 = vmatprep.subr.mxu0 0.0
    %1427 = vmatpush1.msra.mxu0 0.0
    %1428 = vmatprep.subr.mxu0 0.0
    %1429 = vmatpush1.msra.mxu0 0.0
    %1430 = vmatprep.subr.mxu0 0.0
    %1431 = vmatpush1.msra.mxu0 0.0
    %1432 = vmatprep.subr.mxu0 0.0
    %1433 = vmatpush1.msra.mxu0 0.0
    %1434 = vmatprep.subr.mxu0 0.0
    %1435 = vmatpush1.msra.mxu0 0.0
    %1436 = vmatprep.subr.mxu0 0.0
    %1437 = vmatpush1.msra.mxu0 0.0
    %1438 = vmatprep.subr.mxu0 0.0
    %1439 = vmatpush1.msra.mxu0 0.0
    %1440 = vmatprep.subr.mxu0 0.0
    %1441 = vmatpush1.msra.mxu0 0.0
    %1442 = vmatprep.subr.mxu0 0.0
    %1443 = vmatpush1.msra.mxu0 0.0
    %1444 = vmatprep.subr.mxu0 0.0
    %1445 = vmatpush1.msra.mxu0 0.0
    %1446 = vmatprep.mubr.f32.mxu0 0.0
    %1447 = vmatmul.mubr.f32.gmra.mrb[0].mxu0 %v1380
    %v1448 = vpop.f32.mrb[0].mxu0
    %v1449 = vadd.f32 0.0, %v1448
    %v1450 = vpop.f32.mrb[0].mxu0
    %1451 = vdwg.mxu0
    %v1453 = vsel %vm204, %v1449, 0
    %1455 = vmatprep.subr.mxu0 0.0
    %1456 = vmatpush1.msra.mxu0 %v49
    %1457 = vmatprep.subr.mxu0 0.0
    %1458 = vmatpush1.msra.mxu0 0.0
    %1459 = vmatprep.subr.mxu0 0.0
    %1460 = vmatpush1.msra.mxu0 0.0
    %1461 = vmatprep.subr.mxu0 0.0
    %1462 = vmatpush1.msra.mxu0 0.0
    %1463 = vmatprep.subr.mxu0 0.0
    %1464 = vmatpush1.msra.mxu0 0.0
    %1465 = vmatprep.subr.mxu0 0.0
    %1466 = vmatpush1.msra.mxu0 0.0
    %1467 = vmatprep.subr.mxu0 0.0
    %1468 = vmatpush1.msra.mxu0 0.0
    %1469 = vmatprep.subr.mxu0 0.0
    %1470 = vmatpush1.msra.mxu0 0.0
    %1471 = vmatprep.subr.mxu0 0.0
    %1472 = vmatpush1.msra.mxu0 0.0
    %1473 = vmatprep.subr.mxu0 0.0
    %1474 = vmatpush1.msra.mxu0 0.0
    %1475 = vmatprep.subr.mxu0 0.0
    %1476 = vmatpush1.msra.mxu0 0.0
    %1477 = vmatprep.subr.mxu0 0.0
    %1478 = vmatpush1.msra.mxu0 0.0
    %1479 = vmatprep.subr.mxu0 0.0
    %1480 = vmatpush1.msra.mxu0 0.0
    %1481 = vmatprep.subr.mxu0 0.0
    %1482 = vmatpush1.msra.mxu0 0.0
    %1483 = vmatprep.subr.mxu0 0.0
    %1484 = vmatpush1.msra.mxu0 0.0
    %1485 = vmatprep.subr.mxu0 0.0
    %1486 = vmatpush1.msra.mxu0 0.0
    %1487 = vmatprep.subr.mxu0 0.0
    %1488 = vmatpush1.msra.mxu0 0.0
    %1489 = vmatprep.subr.mxu0 0.0
    %1490 = vmatpush1.msra.mxu0 0.0
    %1491 = vmatprep.subr.mxu0 0.0
    %1492 = vmatpush1.msra.mxu0 0.0
    %1493 = vmatprep.subr.mxu0 0.0
    %1494 = vmatpush1.msra.mxu0 0.0
    %1495 = vmatprep.subr.mxu0 0.0
    %1496 = vmatpush1.msra.mxu0 0.0
    %1497 = vmatprep.subr.mxu0 0.0
    %1498 = vmatpush1.msra.mxu0 0.0
    %1499 = vmatprep.subr.mxu0 0.0
    %1500 = vmatpush1.msra.mxu0 0.0
    %1501 = vmatprep.subr.mxu0 0.0
    %1502 = vmatpush1.msra.mxu0 0.0
    %1503 = vmatprep.subr.mxu0 0.0
    %1504 = vmatpush1.msra.mxu0 0.0
    %1505 = vmatprep.subr.mxu0 0.0
    %1506 = vmatpush1.msra.mxu0 0.0
    %1507 = vmatprep.subr.mxu0 0.0
    %1508 = vmatpush1.msra.mxu0 0.0
    %1509 = vmatprep.subr.mxu0 0.0
    %1510 = vmatpush1.msra.mxu0 0.0
    %1511 = vmatprep.subr.mxu0 0.0
    %1512 = vmatpush1.msra.mxu0 0.0
    %1513 = vmatprep.subr.mxu0 0.0
    %1514 = vmatpush1.msra.mxu0 0.0
    %1515 = vmatprep.subr.mxu0 0.0
    %1516 = vmatpush1.msra.mxu0 0.0
    %1517 = vmatprep.subr.mxu0 0.0
    %1518 = vmatpush1.msra.mxu0 0.0
    %1519 = vmatprep.mubr.f32.mxu0 0.0
    %1520 = vmatmul.mubr.f32.gmra.mrb[0].mxu0 %v1453
    %v1521 = vpop.f32.mrb[0].mxu0
    %v1522 = vadd.f32 0.0, %v1521
    %v1523 = vpop.f32.mrb[0].mxu0
    %1524 = vdwg.mxu0
    %v1525 = vadd.f32 %v1375, %v1522
    %1526 = vrot.lane.b32.xlu0 %v198, 64
    %v1527 = vpop.permute.xlu0 %1526
    %v1530 = vsel %vm204, %v924, 0
    %1532 = vmatprep.subr.mxu0 0.0
    %1533 = vmatpush1.msra.mxu0 %v1527
    %1534 = vmatprep.subr.mxu0 0.0
    %1535 = vmatpush1.msra.mxu0 0.0
    %1536 = vmatprep.subr.mxu0 0.0
    %1537 = vmatpush1.msra.mxu0 0.0
    %1538 = vmatprep.subr.mxu0 0.0
    %1539 = vmatpush1.msra.mxu0 0.0
    %1540 = vmatprep.subr.mxu0 0.0
    %1541 = vmatpush1.msra.mxu0 0.0
    %1542 = vmatprep.subr.mxu0 0.0
    %1543 = vmatpush1.msra.mxu0 0.0
    %1544 = vmatprep.subr.mxu0 0.0
    %1545 = vmatpush1.msra.mxu0 0.0
    %1546 = vmatprep.subr.mxu0 0.0
    %1547 = vmatpush1.msra.mxu0 0.0
    %1548 = vmatprep.subr.mxu0 0.0
    %1549 = vmatpush1.msra.mxu0 0.0
    %1550 = vmatprep.subr.mxu0 0.0
    %1551 = vmatpush1.msra.mxu0 0.0
    %1552 = vmatprep.subr.mxu0 0.0
    %1553 = vmatpush1.msra.mxu0 0.0
    %1554 = vmatprep.subr.mxu0 0.0
    %1555 = vmatpush1.msra.mxu0 0.0
    %1556 = vmatprep.subr.mxu0 0.0
    %1557 = vmatpush1.msra.mxu0 0.0
    %1558 = vmatprep.subr.mxu0 0.0
    %1559 = vmatpush1.msra.mxu0 0.0
    %1560 = vmatprep.subr.mxu0 0.0
    %1561 = vmatpush1.msra.mxu0 0.0
    %1562 = vmatprep.subr.mxu0 0.0
    %1563 = vmatpush1.msra.mxu0 0.0
    %1564 = vmatprep.subr.mxu0 0.0
    %1565 = vmatpush1.msra.mxu0 0.0
    %1566 = vmatprep.subr.mxu0 0.0
    %1567 = vmatpush1.msra.mxu0 0.0
    %1568 = vmatprep.subr.mxu0 0.0
    %1569 = vmatpush1.msra.mxu0 0.0
    %1570 = vmatprep.subr.mxu0 0.0
    %1571 = vmatpush1.msra.mxu0 0.0
    %1572 = vmatprep.subr.mxu0 0.0
    %1573 = vmatpush1.msra.mxu0 0.0
    %1574 = vmatprep.subr.mxu0 0.0
    %1575 = vmatpush1.msra.mxu0 0.0
    %1576 = vmatprep.subr.mxu0 0.0
    %1577 = vmatpush1.msra.mxu0 0.0
    %1578 = vmatprep.subr.mxu0 0.0
    %1579 = vmatpush1.msra.mxu0 0.0
    %1580 = vmatprep.subr.mxu0 0.0
    %1581 = vmatpush1.msra.mxu0 0.0
    %1582 = vmatprep.subr.mxu0 0.0
    %1583 = vmatpush1.msra.mxu0 0.0
    %1584 = vmatprep.subr.mxu0 0.0
    %1585 = vmatpush1.msra.mxu0 0.0
    %1586 = vmatprep.subr.mxu0 0.0
    %1587 = vmatpush1.msra.mxu0 0.0
    %1588 = vmatprep.subr.mxu0 0.0
    %1589 = vmatpush1.msra.mxu0 0.0
    %1590 = vmatprep.subr.mxu0 0.0
    %1591 = vmatpush1.msra.mxu0 0.0
    %1592 = vmatprep.subr.mxu0 0.0
    %1593 = vmatpush1.msra.mxu0 0.0
    %1594 = vmatprep.subr.mxu0 0.0
    %1595 = vmatpush1.msra.mxu0 0.0
    %1596 = vmatprep.mubr.f32.mxu0 0.0
    %1597 = vmatmul.mubr.f32.gmra.mrb[0].mxu0 %v1530
    %v1598 = vpop.f32.mrb[0].mxu0
    %v1599 = vadd.f32 0.0, %v1598
    %v1600 = vpop.f32.mrb[0].mxu0
    %1601 = vdwg.mxu0
    %1602 = vrot.lane.b32.xlu0 %v198, 56
    %v1603 = vpop.permute.xlu0 %1602
    %v1606 = vsel %vm204, %v925, 0
    %1608 = vmatprep.subr.mxu0 0.0
    %1609 = vmatpush1.msra.mxu0 %v1603
    %1610 = vmatprep.subr.mxu0 0.0
    %1611 = vmatpush1.msra.mxu0 0.0
    %1612 = vmatprep.subr.mxu0 0.0
    %1613 = vmatpush1.msra.mxu0 0.0
    %1614 = vmatprep.subr.mxu0 0.0
    %1615 = vmatpush1.msra.mxu0 0.0
    %1616 = vmatprep.subr.mxu0 0.0
    %1617 = vmatpush1.msra.mxu0 0.0
    %1618 = vmatprep.subr.mxu0 0.0
    %1619 = vmatpush1.msra.mxu0 0.0
    %1620 = vmatprep.subr.mxu0 0.0
    %1621 = vmatpush1.msra.mxu0 0.0
    %1622 = vmatprep.subr.mxu0 0.0
    %1623 = vmatpush1.msra.mxu0 0.0
    %1624 = vmatprep.subr.mxu0 0.0
    %1625 = vmatpush1.msra.mxu0 0.0
    %1626 = vmatprep.subr.mxu0 0.0
    %1627 = vmatpush1.msra.mxu0 0.0
    %1628 = vmatprep.subr.mxu0 0.0
    %1629 = vmatpush1.msra.mxu0 0.0
    %1630 = vmatprep.subr.mxu0 0.0
    %1631 = vmatpush1.msra.mxu0 0.0
    %1632 = vmatprep.subr.mxu0 0.0
    %1633 = vmatpush1.msra.mxu0 0.0
    %1634 = vmatprep.subr.mxu0 0.0
    %1635 = vmatpush1.msra.mxu0 0.0
    %1636 = vmatprep.subr.mxu0 0.0
    %1637 = vmatpush1.msra.mxu0 0.0
    %1638 = vmatprep.subr.mxu0 0.0
    %1639 = vmatpush1.msra.mxu0 0.0
    %1640 = vmatprep.subr.mxu0 0.0
    %1641 = vmatpush1.msra.mxu0 0.0
    %1642 = vmatprep.subr.mxu0 0.0
    %1643 = vmatpush1.msra.mxu0 0.0
    %1644 = vmatprep.subr.mxu0 0.0
    %1645 = vmatpush1.msra.mxu0 0.0
    %1646 = vmatprep.subr.mxu0 0.0
    %1647 = vmatpush1.msra.mxu0 0.0
    %1648 = vmatprep.subr.mxu0 0.0
    %1649 = vmatpush1.msra.mxu0 0.0
    %1650 = vmatprep.subr.mxu0 0.0
    %1651 = vmatpush1.msra.mxu0 0.0
    %1652 = vmatprep.subr.mxu0 0.0
    %1653 = vmatpush1.msra.mxu0 0.0
    %1654 = vmatprep.subr.mxu0 0.0
    %1655 = vmatpush1.msra.mxu0 0.0
    %1656 = vmatprep.subr.mxu0 0.0
    %1657 = vmatpush1.msra.mxu0 0.0
    %1658 = vmatprep.subr.mxu0 0.0
    %1659 = vmatpush1.msra.mxu0 0.0
    %1660 = vmatprep.subr.mxu0 0.0
    %1661 = vmatpush1.msra.mxu0 0.0
    %1662 = vmatprep.subr.mxu0 0.0
    %1663 = vmatpush1.msra.mxu0 0.0
    %1664 = vmatprep.subr.mxu0 0.0
    %1665 = vmatpush1.msra.mxu0 0.0
    %1666 = vmatprep.subr.mxu0 0.0
    %1667 = vmatpush1.msra.mxu0 0.0
    %1668 = vmatprep.subr.mxu0 0.0
    %1669 = vmatpush1.msra.mxu0 0.0
    %1670 = vmatprep.subr.mxu0 0.0
    %1671 = vmatpush1.msra.mxu0 0.0
    %1672 = vmatprep.mubr.f32.mxu0 0.0
    %1673 = vmatmul.mubr.f32.gmra.mrb[0].mxu0 %v1606
    %v1674 = vpop.f32.mrb[0].mxu0
    %v1675 = vadd.f32 0.0, %v1674
    %v1676 = vpop.f32.mrb[0].mxu0
    %1677 = vdwg.mxu0
    %v1679 = vsel %vm204, %v1675, 0
    %1681 = vmatprep.subr.mxu0 0.0
    %1682 = vmatpush1.msra.mxu0 %v47
    %1683 = vmatprep.subr.mxu0 0.0
    %1684 = vmatpush1.msra.mxu0 0.0
    %1685 = vmatprep.subr.mxu0 0.0
    %1686 = vmatpush1.msra.mxu0 0.0
    %1687 = vmatprep.subr.mxu0 0.0
    %1688 = vmatpush1.msra.mxu0 0.0
    %1689 = vmatprep.subr.mxu0 0.0
    %1690 = vmatpush1.msra.mxu0 0.0
    %1691 = vmatprep.subr.mxu0 0.0
    %1692 = vmatpush1.msra.mxu0 0.0
    %1693 = vmatprep.subr.mxu0 0.0
    %1694 = vmatpush1.msra.mxu0 0.0
    %1695 = vmatprep.subr.mxu0 0.0
    %1696 = vmatpush1.msra.mxu0 0.0
    %1697 = vmatprep.subr.mxu0 0.0
    %1698 = vmatpush1.msra.mxu0 0.0
    %1699 = vmatprep.subr.mxu0 0.0
    %1700 = vmatpush1.msra.mxu0 0.0
    %1701 = vmatprep.subr.mxu0 0.0
    %1702 = vmatpush1.msra.mxu0 0.0
    %1703 = vmatprep.subr.mxu0 0.0
    %1704 = vmatpush1.msra.mxu0 0.0
    %1705 = vmatprep.subr.mxu0 0.0
    %1706 = vmatpush1.msra.mxu0 0.0
    %1707 = vmatprep.subr.mxu0 0.0
    %1708 = vmatpush1.msra.mxu0 0.0
    %1709 = vmatprep.subr.mxu0 0.0
    %1710 = vmatpush1.msra.mxu0 0.0
    %1711 = vmatprep.subr.mxu0 0.0
    %1712 = vmatpush1.msra.mxu0 0.0
    %1713 = vmatprep.subr.mxu0 0.0
    %1714 = vmatpush1.msra.mxu0 0.0
    %1715 = vmatprep.subr.mxu0 0.0
    %1716 = vmatpush1.msra.mxu0 0.0
    %1717 = vmatprep.subr.mxu0 0.0
    %1718 = vmatpush1.msra.mxu0 0.0
    %1719 = vmatprep.subr.mxu0 0.0
    %1720 = vmatpush1.msra.mxu0 0.0
    %1721 = vmatprep.subr.mxu0 0.0
    %1722 = vmatpush1.msra.mxu0 0.0
    %1723 = vmatprep.subr.mxu0 0.0
    %1724 = vmatpush1.msra.mxu0 0.0
    %1725 = vmatprep.subr.mxu0 0.0
    %1726 = vmatpush1.msra.mxu0 0.0
    %1727 = vmatprep.subr.mxu0 0.0
    %1728 = vmatpush1.msra.mxu0 0.0
    %1729 = vmatprep.subr.mxu0 0.0
    %1730 = vmatpush1.msra.mxu0 0.0
    %1731 = vmatprep.subr.mxu0 0.0
    %1732 = vmatpush1.msra.mxu0 0.0
    %1733 = vmatprep.subr.mxu0 0.0
    %1734 = vmatpush1.msra.mxu0 0.0
    %1735 = vmatprep.subr.mxu0 0.0
    %1736 = vmatpush1.msra.mxu0 0.0
    %1737 = vmatprep.subr.mxu0 0.0
    %1738 = vmatpush1.msra.mxu0 0.0
    %1739 = vmatprep.subr.mxu0 0.0
    %1740 = vmatpush1.msra.mxu0 0.0
    %1741 = vmatprep.subr.mxu0 0.0
    %1742 = vmatpush1.msra.mxu0 0.0
    %1743 = vmatprep.subr.mxu0 0.0
    %1744 = vmatpush1.msra.mxu0 0.0
    %1745 = vmatprep.mubr.f32.mxu0 0.0
    %1746 = vmatmul.mubr.f32.gmra.mrb[0].mxu0 %v1679
    %v1747 = vpop.f32.mrb[0].mxu0
    %v1748 = vadd.f32 0.0, %v1747
    %v1749 = vpop.f32.mrb[0].mxu0
    %1750 = vdwg.mxu0
    %v1752 = vsel %vm204, %v1599, 0
    %1754 = vmatprep.subr.mxu0 0.0
    %1755 = vmatpush1.msra.mxu0 %v46
    %1756 = vmatprep.subr.mxu0 0.0
    %1757 = vmatpush1.msra.mxu0 0.0
    %1758 = vmatprep.subr.mxu0 0.0
    %1759 = vmatpush1.msra.mxu0 0.0
    %1760 = vmatprep.subr.mxu0 0.0
    %1761 = vmatpush1.msra.mxu0 0.0
    %1762 = vmatprep.subr.mxu0 0.0
    %1763 = vmatpush1.msra.mxu0 0.0
    %1764 = vmatprep.subr.mxu0 0.0
    %1765 = vmatpush1.msra.mxu0 0.0
    %1766 = vmatprep.subr.mxu0 0.0
    %1767 = vmatpush1.msra.mxu0 0.0
    %1768 = vmatprep.subr.mxu0 0.0
    %1769 = vmatpush1.msra.mxu0 0.0
    %1770 = vmatprep.subr.mxu0 0.0
    %1771 = vmatpush1.msra.mxu0 0.0
    %1772 = vmatprep.subr.mxu0 0.0
    %1773 = vmatpush1.msra.mxu0 0.0
    %1774 = vmatprep.subr.mxu0 0.0
    %1775 = vmatpush1.msra.mxu0 0.0
    %1776 = vmatprep.subr.mxu0 0.0
    %1777 = vmatpush1.msra.mxu0 0.0
    %1778 = vmatprep.subr.mxu0 0.0
    %1779 = vmatpush1.msra.mxu0 0.0
    %1780 = vmatprep.subr.mxu0 0.0
    %1781 = vmatpush1.msra.mxu0 0.0
    %1782 = vmatprep.subr.mxu0 0.0
    %1783 = vmatpush1.msra.mxu0 0.0
    %1784 = vmatprep.subr.mxu0 0.0
    %1785 = vmatpush1.msra.mxu0 0.0
    %1786 = vmatprep.subr.mxu0 0.0
    %1787 = vmatpush1.msra.mxu0 0.0
    %1788 = vmatprep.subr.mxu0 0.0
    %1789 = vmatpush1.msra.mxu0 0.0
    %1790 = vmatprep.subr.mxu0 0.0
    %1791 = vmatpush1.msra.mxu0 0.0
    %1792 = vmatprep.subr.mxu0 0.0
    %1793 = vmatpush1.msra.mxu0 0.0
    %1794 = vmatprep.subr.mxu0 0.0
    %1795 = vmatpush1.msra.mxu0 0.0
    %1796 = vmatprep.subr.mxu0 0.0
    %1797 = vmatpush1.msra.mxu0 0.0
    %1798 = vmatprep.subr.mxu0 0.0
    %1799 = vmatpush1.msra.mxu0 0.0
    %1800 = vmatprep.subr.mxu0 0.0
    %1801 = vmatpush1.msra.mxu0 0.0
    %1802 = vmatprep.subr.mxu0 0.0
    %1803 = vmatpush1.msra.mxu0 0.0
    %1804 = vmatprep.subr.mxu0 0.0
    %1805 = vmatpush1.msra.mxu0 0.0
    %1806 = vmatprep.subr.mxu0 0.0
    %1807 = vmatpush1.msra.mxu0 0.0
    %1808 = vmatprep.subr.mxu0 0.0
    %1809 = vmatpush1.msra.mxu0 0.0
    %1810 = vmatprep.subr.mxu0 0.0
    %1811 = vmatpush1.msra.mxu0 0.0
    %1812 = vmatprep.subr.mxu0 0.0
    %1813 = vmatpush1.msra.mxu0 0.0
    %1814 = vmatprep.subr.mxu0 0.0
    %1815 = vmatpush1.msra.mxu0 0.0
    %1816 = vmatprep.subr.mxu0 0.0
    %1817 = vmatpush1.msra.mxu0 0.0
    %1818 = vmatprep.mubr.f32.mxu0 0.0
    %1819 = vmatmul.mubr.f32.gmra.mrb[0].mxu0 %v1752
    %v1820 = vpop.f32.mrb[0].mxu0
    %v1821 = vadd.f32 %v1748, %v1820
    %v1822 = vpop.f32.mrb[0].mxu0
    %1823 = vdwg.mxu0
    %1824 = vrot.lane.b32.xlu0 %v198, 48
    %v1825 = vpop.permute.xlu0 %1824
    %v1828 = vsel %vm204, %v926, 0
    %1830 = vmatprep.subr.mxu0 0.0
    %1831 = vmatpush1.msra.mxu0 %v1825
    %1832 = vmatprep.subr.mxu0 0.0
    %1833 = vmatpush1.msra.mxu0 0.0
    %1834 = vmatprep.subr.mxu0 0.0
    %1835 = vmatpush1.msra.mxu0 0.0
    %1836 = vmatprep.subr.mxu0 0.0
    %1837 = vmatpush1.msra.mxu0 0.0
    %1838 = vmatprep.subr.mxu0 0.0
    %1839 = vmatpush1.msra.mxu0 0.0
    %1840 = vmatprep.subr.mxu0 0.0
    %1841 = vmatpush1.msra.mxu0 0.0
    %1842 = vmatprep.subr.mxu0 0.0
    %1843 = vmatpush1.msra.mxu0 0.0
    %1844 = vmatprep.subr.mxu0 0.0
    %1845 = vmatpush1.msra.mxu0 0.0
    %1846 = vmatprep.subr.mxu0 0.0
    %1847 = vmatpush1.msra.mxu0 0.0
    %1848 = vmatprep.subr.mxu0 0.0
    %1849 = vmatpush1.msra.mxu0 0.0
    %1850 = vmatprep.subr.mxu0 0.0
    %1851 = vmatpush1.msra.mxu0 0.0
    %1852 = vmatprep.subr.mxu0 0.0
    %1853 = vmatpush1.msra.mxu0 0.0
    %1854 = vmatprep.subr.mxu0 0.0
    %1855 = vmatpush1.msra.mxu0 0.0
    %1856 = vmatprep.subr.mxu0 0.0
    %1857 = vmatpush1.msra.mxu0 0.0
    %1858 = vmatprep.subr.mxu0 0.0
    %1859 = vmatpush1.msra.mxu0 0.0
    %1860 = vmatprep.subr.mxu0 0.0
    %1861 = vmatpush1.msra.mxu0 0.0
    %1862 = vmatprep.subr.mxu0 0.0
    %1863 = vmatpush1.msra.mxu0 0.0
    %1864 = vmatprep.subr.mxu0 0.0
    %1865 = vmatpush1.msra.mxu0 0.0
    %1866 = vmatprep.subr.mxu0 0.0
    %1867 = vmatpush1.msra.mxu0 0.0
    %1868 = vmatprep.subr.mxu0 0.0
    %1869 = vmatpush1.msra.mxu0 0.0
    %1870 = vmatprep.subr.mxu0 0.0
    %1871 = vmatpush1.msra.mxu0 0.0
    %1872 = vmatprep.subr.mxu0 0.0
    %1873 = vmatpush1.msra.mxu0 0.0
    %1874 = vmatprep.subr.mxu0 0.0
    %1875 = vmatpush1.msra.mxu0 0.0
    %1876 = vmatprep.subr.mxu0 0.0
    %1877 = vmatpush1.msra.mxu0 0.0
    %1878 = vmatprep.subr.mxu0 0.0
    %1879 = vmatpush1.msra.mxu0 0.0
    %1880 = vmatprep.subr.mxu0 0.0
    %1881 = vmatpush1.msra.mxu0 0.0
    %1882 = vmatprep.subr.mxu0 0.0
    %1883 = vmatpush1.msra.mxu0 0.0
    %1884 = vmatprep.subr.mxu0 0.0
    %1885 = vmatpush1.msra.mxu0 0.0
    %1886 = vmatprep.subr.mxu0 0.0
    %1887 = vmatpush1.msra.mxu0 0.0
    %1888 = vmatprep.subr.mxu0 0.0
    %1889 = vmatpush1.msra.mxu0 0.0
    %1890 = vmatprep.subr.mxu0 0.0
    %1891 = vmatpush1.msra.mxu0 0.0
    %1892 = vmatprep.subr.mxu0 0.0
    %1893 = vmatpush1.msra.mxu0 0.0
    %1894 = vmatprep.mubr.f32.mxu0 0.0
    %1895 = vmatmul.mubr.f32.gmra.mrb[0].mxu0 %v1828
    %v1896 = vpop.f32.mrb[0].mxu0
    %v1897 = vadd.f32 0.0, %v1896
    %v1898 = vpop.f32.mrb[0].mxu0
    %1899 = vdwg.mxu0
    %v1901 = vsel %vm204, %v1897, 0
    %1903 = vmatprep.subr.mxu0 0.0
    %1904 = vmatpush1.msra.mxu0 %v48
    %1905 = vmatprep.subr.mxu0 0.0
    %1906 = vmatpush1.msra.mxu0 0.0
    %1907 = vmatprep.subr.mxu0 0.0
    %1908 = vmatpush1.msra.mxu0 0.0
    %1909 = vmatprep.subr.mxu0 0.0
    %1910 = vmatpush1.msra.mxu0 0.0
    %1911 = vmatprep.subr.mxu0 0.0
    %1912 = vmatpush1.msra.mxu0 0.0
    %1913 = vmatprep.subr.mxu0 0.0
    %1914 = vmatpush1.msra.mxu0 0.0
    %1915 = vmatprep.subr.mxu0 0.0
    %1916 = vmatpush1.msra.mxu0 0.0
    %1917 = vmatprep.subr.mxu0 0.0
    %1918 = vmatpush1.msra.mxu0 0.0
    %1919 = vmatprep.subr.mxu0 0.0
    %1920 = vmatpush1.msra.mxu0 0.0
    %1921 = vmatprep.subr.mxu0 0.0
    %1922 = vmatpush1.msra.mxu0 0.0
    %1923 = vmatprep.subr.mxu0 0.0
    %1924 = vmatpush1.msra.mxu0 0.0
    %1925 = vmatprep.subr.mxu0 0.0
    %1926 = vmatpush1.msra.mxu0 0.0
    %1927 = vmatprep.subr.mxu0 0.0
    %1928 = vmatpush1.msra.mxu0 0.0
    %1929 = vmatprep.subr.mxu0 0.0
    %1930 = vmatpush1.msra.mxu0 0.0
    %1931 = vmatprep.subr.mxu0 0.0
    %1932 = vmatpush1.msra.mxu0 0.0
    %1933 = vmatprep.subr.mxu0 0.0
    %1934 = vmatpush1.msra.mxu0 0.0
    %1935 = vmatprep.subr.mxu0 0.0
    %1936 = vmatpush1.msra.mxu0 0.0
    %1937 = vmatprep.subr.mxu0 0.0
    %1938 = vmatpush1.msra.mxu0 0.0
    %1939 = vmatprep.subr.mxu0 0.0
    %1940 = vmatpush1.msra.mxu0 0.0
    %1941 = vmatprep.subr.mxu0 0.0
    %1942 = vmatpush1.msra.mxu0 0.0
    %1943 = vmatprep.subr.mxu0 0.0
    %1944 = vmatpush1.msra.mxu0 0.0
    %1945 = vmatprep.subr.mxu0 0.0
    %1946 = vmatpush1.msra.mxu0 0.0
    %1947 = vmatprep.subr.mxu0 0.0
    %1948 = vmatpush1.msra.mxu0 0.0
    %1949 = vmatprep.subr.mxu0 0.0
    %1950 = vmatpush1.msra.mxu0 0.0
    %1951 = vmatprep.subr.mxu0 0.0
    %1952 = vmatpush1.msra.mxu0 0.0
    %1953 = vmatprep.subr.mxu0 0.0
    %1954 = vmatpush1.msra.mxu0 0.0
    %1955 = vmatprep.subr.mxu0 0.0
    %1956 = vmatpush1.msra.mxu0 0.0
    %1957 = vmatprep.subr.mxu0 0.0
    %1958 = vmatpush1.msra.mxu0 0.0
    %1959 = vmatprep.subr.mxu0 0.0
    %1960 = vmatpush1.msra.mxu0 0.0
    %1961 = vmatprep.subr.mxu0 0.0
    %1962 = vmatpush1.msra.mxu0 0.0
    %1963 = vmatprep.subr.mxu0 0.0
    %1964 = vmatpush1.msra.mxu0 0.0
    %1965 = vmatprep.subr.mxu0 0.0
    %1966 = vmatpush1.msra.mxu0 0.0
    %1967 = vmatprep.mubr.f32.mxu0 0.0
    %1968 = vmatmul.mubr.f32.gmra.mrb[0].mxu0 %v1901
    %v1969 = vpop.f32.mrb[0].mxu0
    %v1970 = vadd.f32 0.0, %v1969
    %v1971 = vpop.f32.mrb[0].mxu0
    %1972 = vdwg.mxu0
    %v1973 = vadd.f32 %v1821, %v1970
    %1974 = vrot.lane.b32.xlu0 %v198, 40
    %v1975 = vpop.permute.xlu0 %1974
    %v1978 = vsel %vm204, %v927, 0
    %1980 = vmatprep.subr.mxu0 0.0
    %1981 = vmatpush1.msra.mxu0 %v1975
    %1982 = vmatprep.subr.mxu0 0.0
    %1983 = vmatpush1.msra.mxu0 0.0
    %1984 = vmatprep.subr.mxu0 0.0
    %1985 = vmatpush1.msra.mxu0 0.0
    %1986 = vmatprep.subr.mxu0 0.0
    %1987 = vmatpush1.msra.mxu0 0.0
    %1988 = vmatprep.subr.mxu0 0.0
    %1989 = vmatpush1.msra.mxu0 0.0
    %1990 = vmatprep.subr.mxu0 0.0
    %1991 = vmatpush1.msra.mxu0 0.0
    %1992 = vmatprep.subr.mxu0 0.0
    %1993 = vmatpush1.msra.mxu0 0.0
    %1994 = vmatprep.subr.mxu0 0.0
    %1995 = vmatpush1.msra.mxu0 0.0
    %1996 = vmatprep.subr.mxu0 0.0
    %1997 = vmatpush1.msra.mxu0 0.0
    %1998 = vmatprep.subr.mxu0 0.0
    %1999 = vmatpush1.msra.mxu0 0.0
    %2000 = vmatprep.subr.mxu0 0.0
    %2001 = vmatpush1.msra.mxu0 0.0
    %2002 = vmatprep.subr.mxu0 0.0
    %2003 = vmatpush1.msra.mxu0 0.0
    %2004 = vmatprep.subr.mxu0 0.0
    %2005 = vmatpush1.msra.mxu0 0.0
    %2006 = vmatprep.subr.mxu0 0.0
    %2007 = vmatpush1.msra.mxu0 0.0
    %2008 = vmatprep.subr.mxu0 0.0
    %2009 = vmatpush1.msra.mxu0 0.0
    %2010 = vmatprep.subr.mxu0 0.0
    %2011 = vmatpush1.msra.mxu0 0.0
    %2012 = vmatprep.subr.mxu0 0.0
    %2013 = vmatpush1.msra.mxu0 0.0
    %2014 = vmatprep.subr.mxu0 0.0
    %2015 = vmatpush1.msra.mxu0 0.0
    %2016 = vmatprep.subr.mxu0 0.0
    %2017 = vmatpush1.msra.mxu0 0.0
    %2018 = vmatprep.subr.mxu0 0.0
    %2019 = vmatpush1.msra.mxu0 0.0
    %2020 = vmatprep.subr.mxu0 0.0
    %2021 = vmatpush1.msra.mxu0 0.0
    %2022 = vmatprep.subr.mxu0 0.0
    %2023 = vmatpush1.msra.mxu0 0.0
    %2024 = vmatprep.subr.mxu0 0.0
    %2025 = vmatpush1.msra.mxu0 0.0
    %2026 = vmatprep.subr.mxu0 0.0
    %2027 = vmatpush1.msra.mxu0 0.0
    %2028 = vmatprep.subr.mxu0 0.0
    %2029 = vmatpush1.msra.mxu0 0.0
    %2030 = vmatprep.subr.mxu0 0.0
    %2031 = vmatpush1.msra.mxu0 0.0
    %2032 = vmatprep.subr.mxu0 0.0
    %2033 = vmatpush1.msra.mxu0 0.0
    %2034 = vmatprep.subr.mxu0 0.0
    %2035 = vmatpush1.msra.mxu0 0.0
    %2036 = vmatprep.subr.mxu0 0.0
    %2037 = vmatpush1.msra.mxu0 0.0
    %2038 = vmatprep.subr.mxu0 0.0
    %2039 = vmatpush1.msra.mxu0 0.0
    %2040 = vmatprep.subr.mxu0 0.0
    %2041 = vmatpush1.msra.mxu0 0.0
    %2042 = vmatprep.subr.mxu0 0.0
    %2043 = vmatpush1.msra.mxu0 0.0
    %2044 = vmatprep.mubr.f32.mxu0 0.0
    %2045 = vmatmul.mubr.f32.gmra.mrb[0].mxu0 %v1978
    %v2046 = vpop.f32.mrb[0].mxu0
    %v2047 = vadd.f32 0.0, %v2046
    %v2048 = vpop.f32.mrb[0].mxu0
    %2049 = vdwg.mxu0
    %v2051 = vsel %vm204, %v2047, 0
    %2053 = vmatprep.subr.mxu0 0.0
    %2054 = vmatpush1.msra.mxu0 %v49
    %2055 = vmatprep.subr.mxu0 0.0
    %2056 = vmatpush1.msra.mxu0 0.0
    %2057 = vmatprep.subr.mxu0 0.0
    %2058 = vmatpush1.msra.mxu0 0.0
    %2059 = vmatprep.subr.mxu0 0.0
    %2060 = vmatpush1.msra.mxu0 0.0
    %2061 = vmatprep.subr.mxu0 0.0
    %2062 = vmatpush1.msra.mxu0 0.0
    %2063 = vmatprep.subr.mxu0 0.0
    %2064 = vmatpush1.msra.mxu0 0.0
    %2065 = vmatprep.subr.mxu0 0.0
    %2066 = vmatpush1.msra.mxu0 0.0
    %2067 = vmatprep.subr.mxu0 0.0
    %2068 = vmatpush1.msra.mxu0 0.0
    %2069 = vmatprep.subr.mxu0 0.0
    %2070 = vmatpush1.msra.mxu0 0.0
    %2071 = vmatprep.subr.mxu0 0.0
    %2072 = vmatpush1.msra.mxu0 0.0
    %2073 = vmatprep.subr.mxu0 0.0
    %2074 = vmatpush1.msra.mxu0 0.0
    %2075 = vmatprep.subr.mxu0 0.0
    %2076 = vmatpush1.msra.mxu0 0.0
    %2077 = vmatprep.subr.mxu0 0.0
    %2078 = vmatpush1.msra.mxu0 0.0
    %2079 = vmatprep.subr.mxu0 0.0
    %2080 = vmatpush1.msra.mxu0 0.0
    %2081 = vmatprep.subr.mxu0 0.0
    %2082 = vmatpush1.msra.mxu0 0.0
    %2083 = vmatprep.subr.mxu0 0.0
    %2084 = vmatpush1.msra.mxu0 0.0
    %2085 = vmatprep.subr.mxu0 0.0
    %2086 = vmatpush1.msra.mxu0 0.0
    %2087 = vmatprep.subr.mxu0 0.0
    %2088 = vmatpush1.msra.mxu0 0.0
    %2089 = vmatprep.subr.mxu0 0.0
    %2090 = vmatpush1.msra.mxu0 0.0
    %2091 = vmatprep.subr.mxu0 0.0
    %2092 = vmatpush1.msra.mxu0 0.0
    %2093 = vmatprep.subr.mxu0 0.0
    %2094 = vmatpush1.msra.mxu0 0.0
    %2095 = vmatprep.subr.mxu0 0.0
    %2096 = vmatpush1.msra.mxu0 0.0
    %2097 = vmatprep.subr.mxu0 0.0
    %2098 = vmatpush1.msra.mxu0 0.0
    %2099 = vmatprep.subr.mxu0 0.0
    %2100 = vmatpush1.msra.mxu0 0.0
    %2101 = vmatprep.subr.mxu0 0.0
    %2102 = vmatpush1.msra.mxu0 0.0
    %2103 = vmatprep.subr.mxu0 0.0
    %2104 = vmatpush1.msra.mxu0 0.0
    %2105 = vmatprep.subr.mxu0 0.0
    %2106 = vmatpush1.msra.mxu0 0.0
    %2107 = vmatprep.subr.mxu0 0.0
    %2108 = vmatpush1.msra.mxu0 0.0
    %2109 = vmatprep.subr.mxu0 0.0
    %2110 = vmatpush1.msra.mxu0 0.0
    %2111 = vmatprep.subr.mxu0 0.0
    %2112 = vmatpush1.msra.mxu0 0.0
    %2113 = vmatprep.subr.mxu0 0.0
    %2114 = vmatpush1.msra.mxu0 0.0
    %2115 = vmatprep.subr.mxu0 0.0
    %2116 = vmatpush1.msra.mxu0 0.0
    %2117 = vmatprep.mubr.f32.mxu0 0.0
    %2118 = vmatmul.mubr.f32.gmra.mrb[0].mxu0 %v2051
    %v2119 = vpop.f32.mrb[0].mxu0
    %v2120 = vadd.f32 0.0, %v2119
    %v2121 = vpop.f32.mrb[0].mxu0
    %2122 = vdwg.mxu0
    %v2123 = vadd.f32 %v1973, %v2120
    %v2124 = vadd.f32 %v32, %v1525
    %v2125 = vadd.f32 %v33, %v2123
    %v2126 = vlaneseq
    %v2127 = vshrl.u32 %v2126, 7
    %v2128 = vsub.s32 0, %v2127
    %v2129 = vrot.slane %v37, %v2128
    %v2130 = vadd.f32 %v2124, %v2129
    %v2131 = vadd.f32 %v2125, %v2129
    %v2132 = vsel %vm62, %v2130, 0.0
    %2133 = vadd.xlane.f32.xlu0 %v2132
    %v2134 = vpop.xlane.xlu0 %2133
    %v2135 = vsel %vm62, %v2131, 0.0
    %2136 = vadd.xlane.f32.xlu0 %v2135
    %v2137 = vpop.xlane.xlu0 %2136
    %v2138 = vmul.f32 %v2134, %v69
    %v2139 = vmul.f32 %v2137, %v69
    %v2140 = vsub.f32 %v2130, %v2138
    %v2141 = vsub.f32 %v2131, %v2139
    %v2142 = vmul.f32 %v2140, %v2140
    %v2143 = vmul.f32 %v2141, %v2141
    %v2144 = vsel %vm62, %v2142, 0.0
    %2145 = vadd.xlane.f32.xlu0 %v2144
    %v2146 = vpop.xlane.xlu0 %2145
    %v2147 = vsel %vm62, %v2143, 0.0
    %2148 = vadd.xlane.f32.xlu0 %v2147
    %v2149 = vpop.xlane.xlu0 %2148
    %v2150 = vmul.f32 %v2146, 0.032258064
    %v2151 = vmul.f32 %v2149, 0.032258064
    %v2152 = vrsqrt.pop %v2150
    %v2153 = vmul.f32 %v2150, %v2152
    %vm2154 = vcmp.eq.f32.partialorder %v2150, inf
    %v2155 = vsel %vm2154, %v2150, %v2153
    %vm2156 = vcmp.eq.f32.partialorder %v2150, 0.0
    %v2157 = vand.u32 %v2150, 2147483648
    %v2158 = vsel %vm2156, %v2157, %v2155
    %v2159 = vrsqrt.pop %v2151
    %v2160 = vmul.f32 %v2151, %v2159
    %vm2161 = vcmp.eq.f32.partialorder %v2151, inf
    %v2162 = vsel %vm2161, %v2151, %v2160
    %vm2163 = vcmp.eq.f32.partialorder %v2151, 0.0
    %v2164 = vand.u32 %v2151, 2147483648
    %v2165 = vsel %vm2163, %v2164, %v2162
    %v2166 = vlaneseq
    %v2167 = vshrl.u32 %v2166, 7
    %v2168 = vsub.s32 0, %v2167
    %v2169 = vrot.slane %v38, %v2168
    %v2170 = vmul.f32 %v2169, %v2140
    %v2171 = vmul.f32 %v2169, %v2141
    %v2172 = vadd.f32 %v2158, 1e-06
    %v2173 = vadd.f32 %v2165, 1e-06
    %v2174 = vrcp.pop %v2172
    %v2175 = vmul.f32 %v2170, %v2174
    %v2176 = vrcp.pop %v2173
    %v2177 = vmul.f32 %v2171, %v2176
    %v2178 = vlaneseq
    %v2179 = vshrl.u32 %v2178, 7
    %v2180 = vsub.s32 0, %v2179
    %v2181 = vrot.slane %v39, %v2180
    %v2182 = vadd.f32 %v2175, %v2181
    %v2183 = vadd.f32 %v2177, %v2181
    %v2184 = vlaneseq
    %v2185 = vshrl.u32 %v2184, 7
    %v2186 = vsub.s32 0, %v2185
    %v2187 = vrot.slane %v40, %v2186
    %v2189 = vsel %vm62, %v2182, 0
    %v2192 = vsel %vm62, %v2183, 0
    %2194 = vmatprep.subr.mxu0 0.0
    %2195 = vmatpush1.msra.mxu0 %v50
    %2196 = vmatprep.subr.mxu0 0.0
    %2197 = vmatpush1.msra.mxu0 %v51
    %2198 = vmatprep.subr.mxu0 0.0
    %2199 = vmatpush1.msra.mxu0 %v52
    %2200 = vmatprep.subr.mxu0 0.0
    %2201 = vmatpush1.msra.mxu0 %v53
    %2202 = vmatprep.subr.mxu0 0.0
    %2203 = vmatpush1.msra.mxu0 0.0
    %2204 = vmatprep.subr.mxu0 0.0
    %2205 = vmatpush1.msra.mxu0 0.0
    %2206 = vmatprep.subr.mxu0 0.0
    %2207 = vmatpush1.msra.mxu0 0.0
    %2208 = vmatprep.subr.mxu0 0.0
    %2209 = vmatpush1.msra.mxu0 0.0
    %2210 = vmatprep.subr.mxu0 0.0
    %2211 = vmatpush1.msra.mxu0 0.0
    %2212 = vmatprep.subr.mxu0 0.0
    %2213 = vmatpush1.msra.mxu0 0.0
    %2214 = vmatprep.subr.mxu0 0.0
    %2215 = vmatpush1.msra.mxu0 0.0
    %2216 = vmatprep.subr.mxu0 0.0
    %2217 = vmatpush1.msra.mxu0 0.0
    %2218 = vmatprep.subr.mxu0 0.0
    %2219 = vmatpush1.msra.mxu0 0.0
    %2220 = vmatprep.subr.mxu0 0.0
    %2221 = vmatpush1.msra.mxu0 0.0
    %2222 = vmatprep.subr.mxu0 0.0
    %2223 = vmatpush1.msra.mxu0 0.0
    %2224 = vmatprep.subr.mxu0 0.0
    %2225 = vmatpush1.msra.mxu0 0.0
    %2226 = vmatprep.subr.mxu0 0.0
    %2227 = vmatpush1.msra.mxu0 0.0
    %2228 = vmatprep.subr.mxu0 0.0
    %2229 = vmatpush1.msra.mxu0 0.0
    %2230 = vmatprep.subr.mxu0 0.0
    %2231 = vmatpush1.msra.mxu0 0.0
    %2232 = vmatprep.subr.mxu0 0.0
    %2233 = vmatpush1.msra.mxu0 0.0
    %2234 = vmatprep.subr.mxu0 0.0
    %2235 = vmatpush1.msra.mxu0 0.0
    %2236 = vmatprep.subr.mxu0 0.0
    %2237 = vmatpush1.msra.mxu0 0.0
    %2238 = vmatprep.subr.mxu0 0.0
    %2239 = vmatpush1.msra.mxu0 0.0
    %2240 = vmatprep.subr.mxu0 0.0
    %2241 = vmatpush1.msra.mxu0 0.0
    %2242 = vmatprep.subr.mxu0 0.0
    %2243 = vmatpush1.msra.mxu0 0.0
    %2244 = vmatprep.subr.mxu0 0.0
    %2245 = vmatpush1.msra.mxu0 0.0
    %2246 = vmatprep.subr.mxu0 0.0
    %2247 = vmatpush1.msra.mxu0 0.0
    %2248 = vmatprep.subr.mxu0 0.0
    %2249 = vmatpush1.msra.mxu0 0.0
    %2250 = vmatprep.subr.mxu0 0.0
    %2251 = vmatpush1.msra.mxu0 0.0
    %2252 = vmatprep.subr.mxu0 0.0
    %2253 = vmatpush1.msra.mxu0 0.0
    %2254 = vmatprep.subr.mxu0 0.0
    %2255 = vmatpush1.msra.mxu0 0.0
    %2256 = vmatprep.subr.mxu0 0.0
    %2257 = vmatpush1.msra.mxu0 0.0
    %2258 = vmatprep.mubr.f32.mxu0 0.0
    %2259 = vmatmul.mubr.f32.gmra.mrb[0].mxu0 %v2189
    %v2260 = vpop.f32.mrb[0].mxu0
    %v2261 = vadd.f32 %v2187, %v2260
    %v2262 = vpop.f32.mrb[0].mxu0
    %2263 = vmatprep.mubr.f32.mxu0 0.0
    %2264 = vmatmul.mubr.f32.gmra.mrb[0].mxu0 %v2192
    %v2265 = vpop.f32.mrb[0].mxu0
    %v2266 = vadd.f32 %v2187, %v2265
    %v2267 = vpop.f32.mrb[0].mxu0
    %2268 = vdwg.mxu0
    %v2269 = vmax.f32 %v2261, 0.0
    %v2270 = vmax.f32 %v2266, 0.0
    %v2271 = vlaneseq
    %v2272 = vshrl.u32 %v2271, 7
    %v2273 = vsub.s32 0, %v2272
    %v2274 = vrot.slane %v41, %v2273
    %vm2275 = vcmask 523264
    %v2277 = vsel %vm2275, %v2269, 0
    %v2280 = vsel %vm2275, %v2270, 0
    %2282 = vmatprep.subr.mxu0 0.0
    %2283 = vmatpush1.msra.mxu0 %v54
    %2284 = vmatprep.subr.mxu0 0.0
    %2285 = vmatpush1.msra.mxu0 %v55
    %2286 = vmatprep.subr.mxu0 0.0
    %2287 = vmatpush1.msra.mxu0 %v56
    %2288 = vmatprep.subr.mxu0 0.0
    %2289 = vmatpush1.msra.mxu0 %v57
    %2290 = vmatprep.subr.mxu0 0.0
    %2291 = vmatpush1.msra.mxu0 %v58
    %2292 = vmatprep.subr.mxu0 0.0
    %2293 = vmatpush1.msra.mxu0 %v59
    %2294 = vmatprep.subr.mxu0 0.0
    %2295 = vmatpush1.msra.mxu0 %v60
    %2296 = vmatprep.subr.mxu0 0.0
    %2297 = vmatpush1.msra.mxu0 %v61
    %2298 = vmatprep.subr.mxu0 0.0
    %2299 = vmatpush1.msra.mxu0 0.0
    %2300 = vmatprep.subr.mxu0 0.0
    %2301 = vmatpush1.msra.mxu0 0.0
    %2302 = vmatprep.subr.mxu0 0.0
    %2303 = vmatpush1.msra.mxu0 0.0
    %2304 = vmatprep.subr.mxu0 0.0
    %2305 = vmatpush1.msra.mxu0 0.0
    %2306 = vmatprep.subr.mxu0 0.0
    %2307 = vmatpush1.msra.mxu0 0.0
    %2308 = vmatprep.subr.mxu0 0.0
    %2309 = vmatpush1.msra.mxu0 0.0
    %2310 = vmatprep.subr.mxu0 0.0
    %2311 = vmatpush1.msra.mxu0 0.0
    %2312 = vmatprep.subr.mxu0 0.0
    %2313 = vmatpush1.msra.mxu0 0.0
    %2314 = vmatprep.subr.mxu0 0.0
    %2315 = vmatpush1.msra.mxu0 0.0
    %2316 = vmatprep.subr.mxu0 0.0
    %2317 = vmatpush1.msra.mxu0 0.0
    %2318 = vmatprep.subr.mxu0 0.0
    %2319 = vmatpush1.msra.mxu0 0.0
    %2320 = vmatprep.subr.mxu0 0.0
    %2321 = vmatpush1.msra.mxu0 0.0
    %2322 = vmatprep.subr.mxu0 0.0
    %2323 = vmatpush1.msra.mxu0 0.0
    %2324 = vmatprep.subr.mxu0 0.0
    %2325 = vmatpush1.msra.mxu0 0.0
    %2326 = vmatprep.subr.mxu0 0.0
    %2327 = vmatpush1.msra.mxu0 0.0
    %2328 = vmatprep.subr.mxu0 0.0
    %2329 = vmatpush1.msra.mxu0 0.0
    %2330 = vmatprep.subr.mxu0 0.0
    %2331 = vmatpush1.msra.mxu0 0.0
    %2332 = vmatprep.subr.mxu0 0.0
    %2333 = vmatpush1.msra.mxu0 0.0
    %2334 = vmatprep.subr.mxu0 0.0
    %2335 = vmatpush1.msra.mxu0 0.0
    %2336 = vmatprep.subr.mxu0 0.0
    %2337 = vmatpush1.msra.mxu0 0.0
    %2338 = vmatprep.subr.mxu0 0.0
    %2339 = vmatpush1.msra.mxu0 0.0
    %2340 = vmatprep.subr.mxu0 0.0
    %2341 = vmatpush1.msra.mxu0 0.0
    %2342 = vmatprep.subr.mxu0 0.0
    %2343 = vmatpush1.msra.mxu0 0.0
    %2344 = vmatprep.subr.mxu0 0.0
    %2345 = vmatpush1.msra.mxu0 0.0
    %2346 = vmatprep.mubr.f32.mxu0 0.0
    %2347 = vmatmul.mubr.f32.gmra.mrb[0].mxu0 %v2277
    %v2348 = vpop.f32.mrb[0].mxu0
    %v2349 = vadd.f32 %v2274, %v2348
    %v2350 = vpop.f32.mrb[0].mxu0
    %2351 = vmatprep.mubr.f32.mxu0 0.0
    %2352 = vmatmul.mubr.f32.gmra.mrb[0].mxu0 %v2280
    %v2353 = vpop.f32.mrb[0].mxu0
    %v2354 = vadd.f32 %v2274, %v2353
    %v2355 = vpop.f32.mrb[0].mxu0
    %2356 = vdwg.mxu0
    %v2357 = vadd.f32 %v2130, %v2349
    %v2358 = vadd.f32 %v2131, %v2354
    %2359 = vst.msk [vmem:[#allocation5] sm:$0xff] %vm62, %v2357
    %2360 = vst.msk [vmem:[#allocation5 + $0x8] sm:$0xff] %vm62, %v2358
    // Predicated region
    $region22: #{encoder_layer_pallas.1} parent=1 // pred_check
      _
    $region23: #{encoder_layer_pallas.1} parent=1 // pred_check_branch
      %2362 = sbr.rel (0) target = $region25
    $region24: #{encoder_layer_pallas.1} parent=1 // pred_region
      %s2364 = ssub.s32 256, 256
      %2365 = vsyncadd [#allocation4], %s2364
      %s2366 = sshll.u32 [#allocation5], 4
      %s2367 = int_to_ptr.vmem [resolvable:$true] %s2366
      %2372 = dma.vmem_to_hbm [thread:$0]  %s2367, 256, %s4, [#allocation4], 128, 128, 8
    $region25: #{encoder_layer_pallas.1} parent=1 // pred_fallthru
      _
    // Predicated region
    $region26: #{encoder_layer_pallas.1} parent=1 // pred_check
      _
    $region27: #{encoder_layer_pallas.1} parent=1 // pred_check_branch
      %2374 = sbr.rel (0) target = $region29
    $region28: #{encoder_layer_pallas.1} parent=1 // pred_region
      %2375 = dma.done [#allocation4], 256
    $region29: #{encoder_layer_pallas.1} parent=1 // pred_fallthru
      _
    %2376 = vsyncpa [#allocation3], 1
    %2377 = vsyncpa [#allocation4], 1

</llo_original>
